<compile_context>
chip_gen: v6e
topology: v6e:2x2x1
jax: 0.10.0
libtpu: 0.0.40
codegen_flags: <defaults>
</compile_context>

<pallas_src>
import numpy as np
import jax
import jax.numpy as jnp
from jax.experimental import pallas as pl
from jax.experimental.pallas import tpu as pltpu


# ------------------------- fused LSTM + Linear kernel -------------------------
def make_fused_rnn_kernel(num_layers, T, B, H):
    """Kernel refs: x, (wih, whh, b) * num_layers, wlin, blin, out."""

    def kernel(*refs):
        x_ref = refs[0]
        o_ref = refs[-1]
        wrefs = refs[1:-1]

        feat = x_ref[...]                                   # (T*B, E_in)
        for layer in range(num_layers):
            wih_ref, whh_ref, b_ref = wrefs[3 * layer: 3 * layer + 3]

            # Hoisted input projection for ALL timesteps: one well-shaped matmul.
            g_pre = (jnp.dot(feat, wih_ref[...],
                             preferred_element_type=jnp.float32)
                     + b_ref[...])                          # (T*B, 4H), lanes=128
            whh = whh_ref[...]                              # (H, 4H)

            h = jnp.zeros((B, H), jnp.float32)
            c = jnp.zeros((B, H), jnp.float32)
            ys = []
            # Static unrolled recurrence (T is small); only h @ Whh is serial.
            for t in range(T):
                gates = g_pre[t * B:(t + 1) * B, :] + jnp.dot(
                    h, whh, preferred_element_type=jnp.float32)   # (B, 4H)
                # One sigmoid over the full 128-lane gate vreg, one tanh slice.
                sg = jax.nn.sigmoid(gates)
                i_g = sg[:, 0 * H:1 * H]
                f_g = sg[:, 1 * H:2 * H]
                o_g = sg[:, 3 * H:4 * H]
                g_g = jnp.tanh(gates[:, 2 * H:3 * H])
                c = f_g * c + i_g * g_g
                h = o_g * jnp.tanh(c)
                ys.append(h)
            feat = jnp.concatenate(ys, axis=0)              # (T*B, H)

        # Linear epilogue on all positions; OUT padded to 128 -> unmasked store.
        wlin_ref, blin_ref = wrefs[-2], wrefs[-1]
        o_ref[...] = (jnp.dot(feat, wlin_ref[...],
                              preferred_element_type=jnp.float32)
                      + blin_ref[...])

    return kernel


def _full_spec(shape):
    nd = len(shape)
    return pl.BlockSpec(shape, lambda: (0,) * nd)


def fused_rnn_pallas(x_flat, lstm_params, wlin_pad, blin_pad, T, B, H):
    """x_flat: (T*B, E) time-major flattened input.  Returns (T*B, OUT_pad)."""
    out_pad = wlin_pad.shape[1]
    args = [x_flat]
    for p in lstm_params:
        args += [p["wih_t"], p["whh_t"], p["b"]]
    args += [wlin_pad, blin_pad]

    return pl.pallas_call(
        make_fused_rnn_kernel(len(lstm_params), T, B, H),
        out_shape=jax.ShapeDtypeStruct((T * B, out_pad), jnp.float32),
        in_specs=[_full_spec(a.shape) for a in args],
        out_specs=_full_spec((T * B, out_pad)),
    )(*args)


# ---------------------------- full forward (glue) -----------------------------
def rnn_forward(params, data, lengths_np):
    """Mirrors RNN.forward: embedding -> pack -> LSTM -> linear(packed.data)."""
    B, T = data.shape
    H = params["lstm"][0]["whh_t"].shape[0]
    OUT = params["lin_w_t"].shape[1]

    emb = jnp.take(params["embedding"], data, axis=0)        # (B, T, E)
    x = jnp.transpose(emb, (1, 0, 2)).astype(jnp.float32)    # (T, B, E)

    # Pad batch to a multiple of 8 sublanes (padded rows are independent and
    # never gathered, so they cannot affect valid outputs).
    B_pad = ((B + 7) // 8) * 8
    if B_pad != B:
        x = jnp.pad(x, ((0, 0), (0, B_pad - B), (0, 0)))
    x_flat = x.reshape(T * B_pad, x.shape[-1])

    # Lane-dense Linear weights: pad OUT up to 128 lanes (zeros).
    OUT_pad = ((OUT + 127) // 128) * 128
    wlin_pad = jnp.zeros((H, OUT_pad), jnp.float32).at[:, :OUT].set(params["lin_w_t"])
    blin_pad = jnp.zeros((1, OUT_pad), jnp.float32).at[:, :OUT].set(params["lin_b"])

    y = fused_rnn_pallas(x_flat, params["lstm"], wlin_pad, blin_pad,
                         T, B_pad, H)                        # (T*B_pad, OUT_pad)
    y = y.reshape(T, B_pad, OUT_pad)

    # pack_padded_sequence(enforce_sorted=False) ordering: sort batch by
    # descending length (stable), then emit (t, b) time-major for t < len.
    # NOTE: the recurrence runs over trailing padded timesteps too (benign for
    # the packed outputs since padding is strictly trailing and the loop is
    # causal; final (h_n, c_n) are not returned by this forward).
    sorted_idx = np.argsort(-lengths_np, kind="stable")
    pack_t, pack_b = [], []
    for t in range(T):
        for b in sorted_idx:
            if lengths_np[b] > t:
                pack_t.append(t)
                pack_b.append(int(b))
    return y[jnp.array(pack_t), jnp.array(pack_b), :OUT]     # (sum(len), OUT)


# ------------------------------ reference (JAX) --------------------------------
def _lstm_layer_ref(x_tbe, wih_t, whh_t, b_row):
    T, B, _ = x_tbe.shape
    H = whh_t.shape[0]

    def step(carry, xt):
        h, c = carry
        g = (xt @ wih_t + b_row) + h @ whh_t
        i = jax.nn.sigmoid(g[:, :H])
        f = jax.nn.sigmoid(g[:, H:2 * H])
        gg = jnp.tanh(g[:, 2 * H:3 * H])
        o = jax.nn.sigmoid(g[:, 3 * H:])
        c = f * c + i * gg
        h = o * jnp.tanh(c)
        return (h, c), h

    (_, _), ys = jax.lax.scan(step, (jnp.zeros((B, H)), jnp.zeros((B, H))), x_tbe)
    return ys


# ----------------------------------- main --------------------------------------
if __name__ == "__main__":
    # rnn_config (LSTM):
    V = 24          # num_embeddings (padding_idx = 23)
    E = 16          # embedding_dim == input_size
    H = 32          # hidden_size
    NUM_LAYERS = 2  # dropout = 0.0
    OUT = V - 2     # linear output dim

    B, T = 4, 8
    lengths_np = np.array([8, 5, 7, 3], dtype=np.int32)

    key = jax.random.PRNGKey(0)
    ks = jax.random.split(key, 4 + 4 * NUM_LAYERS)
    scale = 1.0 / np.sqrt(H)

    # Embedding (padding row zeroed, mirroring padding_idx semantics).
    embedding = jax.random.normal(ks[0], (V, E), jnp.float32)
    embedding = embedding.at[V - 1].set(0.0)

    lstm_params = []
    for l in range(NUM_LAYERS):
        e_in = E if l == 0 else H
        k0, k1, k2, k3 = ks[4 + 4 * l: 8 + 4 * l]
        wih = jax.random.uniform(k0, (4 * H, e_in), jnp.float32, -scale, scale)
        whh = jax.random.uniform(k1, (4 * H, H), jnp.float32, -scale, scale)
        bih = jax.random.uniform(k2, (4 * H,), jnp.float32, -scale, scale)
        bhh = jax.random.uniform(k3, (4 * H,), jnp.float32, -scale, scale)
        lstm_params.append({
            "wih_t": wih.T,                       # (E_in, 4H)
            "whh_t": whh.T,                       # (H, 4H)
            "b": (bih + bhh).reshape(1, 4 * H),   # (1, 4H)
        })

    lin_w = jax.random.uniform(ks[1], (OUT, H), jnp.float32, -scale, scale)
    lin_b = jax.random.uniform(ks[2], (OUT,), jnp.float32, -scale, scale)

    params = {
        "embedding": embedding,
        "lstm": lstm_params,
        "lin_w_t": lin_w.T,                      # (H, OUT)
        "lin_b": lin_b.reshape(1, OUT),
    }

    # Deterministic input tokens; padded positions carry padding_idx.
    data = jax.random.randint(ks[3], (B, T), 0, V - 2, dtype=jnp.int32)
    mask = np.arange(T)[None, :] < lengths_np[:, None]
    data = jnp.where(jnp.asarray(mask), data, V - 1)

    out = rnn_forward(params, data, lengths_np)
    out = jax.block_until_ready(out)
    assert out.shape == (int(lengths_np.sum()), OUT), out.shape

    # Cross-check against a pure-JAX reference of the same math.
    emb = jnp.take(params["embedding"], data, axis=0)
    xr = jnp.transpose(emb, (1, 0, 2))
    for layer in params["lstm"]:
        xr = _lstm_layer_ref(xr, layer["wih_t"], layer["whh_t"], layer["b"])
    sorted_idx = np.argsort(-lengths_np, kind="stable")
    pt, pb = [], []
    for t in range(T):
        for b in sorted_idx:
            if lengths_np[b] > t:
                pt.append(t)
                pb.append(int(b))
    ref = xr[jnp.array(pt), jnp.array(pb), :] @ params["lin_w_t"] + params["lin_b"]
    assert jnp.allclose(out, ref, atol=1e-5, rtol=1e-5), float(jnp.max(jnp.abs(out - ref)))

    print("KERNEL_OK")
</pallas_src>

<mosaic_0001>
module attributes {stable_mosaic.version = 11 : i64} {
  func.func @kernel(%arg0: memref<64x16xf32, #tpu.memory_space<vmem>>, %arg1: memref<16x128xf32, #tpu.memory_space<vmem>>, %arg2: memref<32x128xf32, #tpu.memory_space<vmem>>, %arg3: memref<1x128xf32, #tpu.memory_space<vmem>>, %arg4: memref<32x128xf32, #tpu.memory_space<vmem>>, %arg5: memref<32x128xf32, #tpu.memory_space<vmem>>, %arg6: memref<1x128xf32, #tpu.memory_space<vmem>>, %arg7: memref<32x128xf32, #tpu.memory_space<vmem>>, %arg8: memref<1x128xf32, #tpu.memory_space<vmem>>, %arg9: memref<64x128xf32, #tpu.memory_space<vmem>>) attributes {dimension_semantics = [], scalar_prefetch = 0 : i64, scratch_operands = 0 : i64, tpu.core_type = #tpu.core_type<tc>} {
    %c0 = arith.constant 0 : index
    %c0_0 = arith.constant 0 : index
    %0 = vector.load %arg0[%c0, %c0_0] : memref<64x16xf32, #tpu.memory_space<vmem>>, vector<64x16xf32>
    %c0_1 = arith.constant 0 : index
    %c0_2 = arith.constant 0 : index
    %1 = vector.load %arg1[%c0_1, %c0_2] : memref<16x128xf32, #tpu.memory_space<vmem>>, vector<16x128xf32>
    %cst = arith.constant dense<0.000000e+00> : vector<64x128xf32>
    %2 = tpu.matmul %0, %1, %cst {dimension_numbers = #tpu.dot_dimension_numbers<[1], [0], [0], [1], [0, 0, 1, 1], [], []>} : vector<64x16xf32>, vector<16x128xf32>, vector<64x128xf32> -> vector<64x128xf32>
    %c0_3 = arith.constant 0 : index
    %c0_4 = arith.constant 0 : index
    %3 = vector.load %arg3[%c0_3, %c0_4] : memref<1x128xf32, #tpu.memory_space<vmem>>, vector<1x128xf32>
    %4 = vector.broadcast %3 : vector<1x128xf32> to vector<64x128xf32>
    %5 = arith.addf %2, %4 : vector<64x128xf32>
    %c0_5 = arith.constant 0 : index
    %c0_6 = arith.constant 0 : index
    %6 = vector.load %arg2[%c0_5, %c0_6] : memref<32x128xf32, #tpu.memory_space<vmem>>, vector<32x128xf32>
    %cst_7 = arith.constant 0.000000e+00 : f32
    %7 = vector.broadcast %cst_7 : f32 to vector<8x32xf32>
    %cst_8 = arith.constant 0.000000e+00 : f32
    %8 = vector.broadcast %cst_8 : f32 to vector<8x32xf32>
    %9 = vector.extract_strided_slice %5 {offsets = [0, 0], sizes = [8, 128], strides = [1, 1]} : vector<64x128xf32> to vector<8x128xf32>
    %cst_9 = arith.constant dense<0.000000e+00> : vector<8x128xf32>
    %10 = tpu.matmul %7, %6, %cst_9 {dimension_numbers = #tpu.dot_dimension_numbers<[1], [0], [0], [1], [0, 0, 1, 1], [], []>} : vector<8x32xf32>, vector<32x128xf32>, vector<8x128xf32> -> vector<8x128xf32>
    %11 = arith.addf %9, %10 : vector<8x128xf32>
    %12 = arith.negf %11 : vector<8x128xf32>
    %13 = math.exp %12 : vector<8x128xf32>
    %cst_10 = arith.constant 1.000000e+00 : f32
    %14 = vector.broadcast %cst_10 : f32 to vector<8x128xf32>
    %15 = arith.addf %14, %13 : vector<8x128xf32>
    %16 = arith.divf %14, %15 : vector<8x128xf32>
    %17 = vector.extract_strided_slice %16 {offsets = [0, 0], sizes = [8, 32], strides = [1, 1]} : vector<8x128xf32> to vector<8x32xf32>
    %18 = vector.extract_strided_slice %16 {offsets = [0, 32], sizes = [8, 32], strides = [1, 1]} : vector<8x128xf32> to vector<8x32xf32>
    %19 = vector.extract_strided_slice %16 {offsets = [0, 96], sizes = [8, 32], strides = [1, 1]} : vector<8x128xf32> to vector<8x32xf32>
    %20 = vector.extract_strided_slice %11 {offsets = [0, 64], sizes = [8, 32], strides = [1, 1]} : vector<8x128xf32> to vector<8x32xf32>
    %21 = math.tanh %20 : vector<8x32xf32>
    %22 = arith.mulf %18, %8 : vector<8x32xf32>
    %23 = arith.mulf %17, %21 : vector<8x32xf32>
    %24 = arith.addf %22, %23 : vector<8x32xf32>
    %25 = math.tanh %24 : vector<8x32xf32>
    %26 = arith.mulf %19, %25 : vector<8x32xf32>
    %27 = vector.extract_strided_slice %5 {offsets = [8, 0], sizes = [8, 128], strides = [1, 1]} : vector<64x128xf32> to vector<8x128xf32>
    %cst_11 = arith.constant dense<0.000000e+00> : vector<8x128xf32>
    %28 = tpu.matmul %26, %6, %cst_11 {dimension_numbers = #tpu.dot_dimension_numbers<[1], [0], [0], [1], [0, 0, 1, 1], [], []>} : vector<8x32xf32>, vector<32x128xf32>, vector<8x128xf32> -> vector<8x128xf32>
    %29 = arith.addf %27, %28 : vector<8x128xf32>
    %30 = arith.negf %29 : vector<8x128xf32>
    %31 = math.exp %30 : vector<8x128xf32>
    %cst_12 = arith.constant 1.000000e+00 : f32
    %32 = vector.broadcast %cst_12 : f32 to vector<8x128xf32>
    %33 = arith.addf %32, %31 : vector<8x128xf32>
    %34 = arith.divf %32, %33 : vector<8x128xf32>
    %35 = vector.extract_strided_slice %34 {offsets = [0, 0], sizes = [8, 32], strides = [1, 1]} : vector<8x128xf32> to vector<8x32xf32>
    %36 = vector.extract_strided_slice %34 {offsets = [0, 32], sizes = [8, 32], strides = [1, 1]} : vector<8x128xf32> to vector<8x32xf32>
    %37 = vector.extract_strided_slice %34 {offsets = [0, 96], sizes = [8, 32], strides = [1, 1]} : vector<8x128xf32> to vector<8x32xf32>
    %38 = vector.extract_strided_slice %29 {offsets = [0, 64], sizes = [8, 32], strides = [1, 1]} : vector<8x128xf32> to vector<8x32xf32>
    %39 = math.tanh %38 : vector<8x32xf32>
    %40 = arith.mulf %36, %24 : vector<8x32xf32>
    %41 = arith.mulf %35, %39 : vector<8x32xf32>
    %42 = arith.addf %40, %41 : vector<8x32xf32>
    %43 = math.tanh %42 : vector<8x32xf32>
    %44 = arith.mulf %37, %43 : vector<8x32xf32>
    %45 = vector.extract_strided_slice %5 {offsets = [16, 0], sizes = [8, 128], strides = [1, 1]} : vector<64x128xf32> to vector<8x128xf32>
    %cst_13 = arith.constant dense<0.000000e+00> : vector<8x128xf32>
    %46 = tpu.matmul %44, %6, %cst_13 {dimension_numbers = #tpu.dot_dimension_numbers<[1], [0], [0], [1], [0, 0, 1, 1], [], []>} : vector<8x32xf32>, vector<32x128xf32>, vector<8x128xf32> -> vector<8x128xf32>
    %47 = arith.addf %45, %46 : vector<8x128xf32>
    %48 = arith.negf %47 : vector<8x128xf32>
    %49 = math.exp %48 : vector<8x128xf32>
    %cst_14 = arith.constant 1.000000e+00 : f32
    %50 = vector.broadcast %cst_14 : f32 to vector<8x128xf32>
    %51 = arith.addf %50, %49 : vector<8x128xf32>
    %52 = arith.divf %50, %51 : vector<8x128xf32>
    %53 = vector.extract_strided_slice %52 {offsets = [0, 0], sizes = [8, 32], strides = [1, 1]} : vector<8x128xf32> to vector<8x32xf32>
    %54 = vector.extract_strided_slice %52 {offsets = [0, 32], sizes = [8, 32], strides = [1, 1]} : vector<8x128xf32> to vector<8x32xf32>
    %55 = vector.extract_strided_slice %52 {offsets = [0, 96], sizes = [8, 32], strides = [1, 1]} : vector<8x128xf32> to vector<8x32xf32>
    %56 = vector.extract_strided_slice %47 {offsets = [0, 64], sizes = [8, 32], strides = [1, 1]} : vector<8x128xf32> to vector<8x32xf32>
    %57 = math.tanh %56 : vector<8x32xf32>
    %58 = arith.mulf %54, %42 : vector<8x32xf32>
    %59 = arith.mulf %53, %57 : vector<8x32xf32>
    %60 = arith.addf %58, %59 : vector<8x32xf32>
    %61 = math.tanh %60 : vector<8x32xf32>
    %62 = arith.mulf %55, %61 : vector<8x32xf32>
    %63 = vector.extract_strided_slice %5 {offsets = [24, 0], sizes = [8, 128], strides = [1, 1]} : vector<64x128xf32> to vector<8x128xf32>
    %cst_15 = arith.constant dense<0.000000e+00> : vector<8x128xf32>
    %64 = tpu.matmul %62, %6, %cst_15 {dimension_numbers = #tpu.dot_dimension_numbers<[1], [0], [0], [1], [0, 0, 1, 1], [], []>} : vector<8x32xf32>, vector<32x128xf32>, vector<8x128xf32> -> vector<8x128xf32>
    %65 = arith.addf %63, %64 : vector<8x128xf32>
    %66 = arith.negf %65 : vector<8x128xf32>
    %67 = math.exp %66 : vector<8x128xf32>
    %cst_16 = arith.constant 1.000000e+00 : f32
    %68 = vector.broadcast %cst_16 : f32 to vector<8x128xf32>
    %69 = arith.addf %68, %67 : vector<8x128xf32>
    %70 = arith.divf %68, %69 : vector<8x128xf32>
    %71 = vector.extract_strided_slice %70 {offsets = [0, 0], sizes = [8, 32], strides = [1, 1]} : vector<8x128xf32> to vector<8x32xf32>
    %72 = vector.extract_strided_slice %70 {offsets = [0, 32], sizes = [8, 32], strides = [1, 1]} : vector<8x128xf32> to vector<8x32xf32>
    %73 = vector.extract_strided_slice %70 {offsets = [0, 96], sizes = [8, 32], strides = [1, 1]} : vector<8x128xf32> to vector<8x32xf32>
    %74 = vector.extract_strided_slice %65 {offsets = [0, 64], sizes = [8, 32], strides = [1, 1]} : vector<8x128xf32> to vector<8x32xf32>
    %75 = math.tanh %74 : vector<8x32xf32>
    %76 = arith.mulf %72, %60 : vector<8x32xf32>
    %77 = arith.mulf %71, %75 : vector<8x32xf32>
    %78 = arith.addf %76, %77 : vector<8x32xf32>
    %79 = math.tanh %78 : vector<8x32xf32>
    %80 = arith.mulf %73, %79 : vector<8x32xf32>
    %81 = vector.extract_strided_slice %5 {offsets = [32, 0], sizes = [8, 128], strides = [1, 1]} : vector<64x128xf32> to vector<8x128xf32>
    %cst_17 = arith.constant dense<0.000000e+00> : vector<8x128xf32>
    %82 = tpu.matmul %80, %6, %cst_17 {dimension_numbers = #tpu.dot_dimension_numbers<[1], [0], [0], [1], [0, 0, 1, 1], [], []>} : vector<8x32xf32>, vector<32x128xf32>, vector<8x128xf32> -> vector<8x128xf32>
    %83 = arith.addf %81, %82 : vector<8x128xf32>
    %84 = arith.negf %83 : vector<8x128xf32>
    %85 = math.exp %84 : vector<8x128xf32>
    %cst_18 = arith.constant 1.000000e+00 : f32
    %86 = vector.broadcast %cst_18 : f32 to vector<8x128xf32>
    %87 = arith.addf %86, %85 : vector<8x128xf32>
    %88 = arith.divf %86, %87 : vector<8x128xf32>
    %89 = vector.extract_strided_slice %88 {offsets = [0, 0], sizes = [8, 32], strides = [1, 1]} : vector<8x128xf32> to vector<8x32xf32>
    %90 = vector.extract_strided_slice %88 {offsets = [0, 32], sizes = [8, 32], strides = [1, 1]} : vector<8x128xf32> to vector<8x32xf32>
    %91 = vector.extract_strided_slice %88 {offsets = [0, 96], sizes = [8, 32], strides = [1, 1]} : vector<8x128xf32> to vector<8x32xf32>
    %92 = vector.extract_strided_slice %83 {offsets = [0, 64], sizes = [8, 32], strides = [1, 1]} : vector<8x128xf32> to vector<8x32xf32>
    %93 = math.tanh %92 : vector<8x32xf32>
    %94 = arith.mulf %90, %78 : vector<8x32xf32>
    %95 = arith.mulf %89, %93 : vector<8x32xf32>
    %96 = arith.addf %94, %95 : vector<8x32xf32>
    %97 = math.tanh %96 : vector<8x32xf32>
    %98 = arith.mulf %91, %97 : vector<8x32xf32>
    %99 = vector.extract_strided_slice %5 {offsets = [40, 0], sizes = [8, 128], strides = [1, 1]} : vector<64x128xf32> to vector<8x128xf32>
    %cst_19 = arith.constant dense<0.000000e+00> : vector<8x128xf32>
    %100 = tpu.matmul %98, %6, %cst_19 {dimension_numbers = #tpu.dot_dimension_numbers<[1], [0], [0], [1], [0, 0, 1, 1], [], []>} : vector<8x32xf32>, vector<32x128xf32>, vector<8x128xf32> -> vector<8x128xf32>
    %101 = arith.addf %99, %100 : vector<8x128xf32>
    %102 = arith.negf %101 : vector<8x128xf32>
    %103 = math.exp %102 : vector<8x128xf32>
    %cst_20 = arith.constant 1.000000e+00 : f32
    %104 = vector.broadcast %cst_20 : f32 to vector<8x128xf32>
    %105 = arith.addf %104, %103 : vector<8x128xf32>
    %106 = arith.divf %104, %105 : vector<8x128xf32>
    %107 = vector.extract_strided_slice %106 {offsets = [0, 0], sizes = [8, 32], strides = [1, 1]} : vector<8x128xf32> to vector<8x32xf32>
    %108 = vector.extract_strided_slice %106 {offsets = [0, 32], sizes = [8, 32], strides = [1, 1]} : vector<8x128xf32> to vector<8x32xf32>
    %109 = vector.extract_strided_slice %106 {offsets = [0, 96], sizes = [8, 32], strides = [1, 1]} : vector<8x128xf32> to vector<8x32xf32>
    %110 = vector.extract_strided_slice %101 {offsets = [0, 64], sizes = [8, 32], strides = [1, 1]} : vector<8x128xf32> to vector<8x32xf32>
    %111 = math.tanh %110 : vector<8x32xf32>
    %112 = arith.mulf %108, %96 : vector<8x32xf32>
    %113 = arith.mulf %107, %111 : vector<8x32xf32>
    %114 = arith.addf %112, %113 : vector<8x32xf32>
    %115 = math.tanh %114 : vector<8x32xf32>
    %116 = arith.mulf %109, %115 : vector<8x32xf32>
    %117 = vector.extract_strided_slice %5 {offsets = [48, 0], sizes = [8, 128], strides = [1, 1]} : vector<64x128xf32> to vector<8x128xf32>
    %cst_21 = arith.constant dense<0.000000e+00> : vector<8x128xf32>
    %118 = tpu.matmul %116, %6, %cst_21 {dimension_numbers = #tpu.dot_dimension_numbers<[1], [0], [0], [1], [0, 0, 1, 1], [], []>} : vector<8x32xf32>, vector<32x128xf32>, vector<8x128xf32> -> vector<8x128xf32>
    %119 = arith.addf %117, %118 : vector<8x128xf32>
    %120 = arith.negf %119 : vector<8x128xf32>
    %121 = math.exp %120 : vector<8x128xf32>
    %cst_22 = arith.constant 1.000000e+00 : f32
    %122 = vector.broadcast %cst_22 : f32 to vector<8x128xf32>
    %123 = arith.addf %122, %121 : vector<8x128xf32>
    %124 = arith.divf %122, %123 : vector<8x128xf32>
    %125 = vector.extract_strided_slice %124 {offsets = [0, 0], sizes = [8, 32], strides = [1, 1]} : vector<8x128xf32> to vector<8x32xf32>
    %126 = vector.extract_strided_slice %124 {offsets = [0, 32], sizes = [8, 32], strides = [1, 1]} : vector<8x128xf32> to vector<8x32xf32>
    %127 = vector.extract_strided_slice %124 {offsets = [0, 96], sizes = [8, 32], strides = [1, 1]} : vector<8x128xf32> to vector<8x32xf32>
    %128 = vector.extract_strided_slice %119 {offsets = [0, 64], sizes = [8, 32], strides = [1, 1]} : vector<8x128xf32> to vector<8x32xf32>
    %129 = math.tanh %128 : vector<8x32xf32>
    %130 = arith.mulf %126, %114 : vector<8x32xf32>
    %131 = arith.mulf %125, %129 : vector<8x32xf32>
    %132 = arith.addf %130, %131 : vector<8x32xf32>
    %133 = math.tanh %132 : vector<8x32xf32>
    %134 = arith.mulf %127, %133 : vector<8x32xf32>
    %135 = vector.extract_strided_slice %5 {offsets = [56, 0], sizes = [8, 128], strides = [1, 1]} : vector<64x128xf32> to vector<8x128xf32>
    %cst_23 = arith.constant dense<0.000000e+00> : vector<8x128xf32>
    %136 = tpu.matmul %134, %6, %cst_23 {dimension_numbers = #tpu.dot_dimension_numbers<[1], [0], [0], [1], [0, 0, 1, 1], [], []>} : vector<8x32xf32>, vector<32x128xf32>, vector<8x128xf32> -> vector<8x128xf32>
    %137 = arith.addf %135, %136 : vector<8x128xf32>
    %138 = arith.negf %137 : vector<8x128xf32>
    %139 = math.exp %138 : vector<8x128xf32>
    %cst_24 = arith.constant 1.000000e+00 : f32
    %140 = vector.broadcast %cst_24 : f32 to vector<8x128xf32>
    %141 = arith.addf %140, %139 : vector<8x128xf32>
    %142 = arith.divf %140, %141 : vector<8x128xf32>
    %143 = vector.extract_strided_slice %142 {offsets = [0, 0], sizes = [8, 32], strides = [1, 1]} : vector<8x128xf32> to vector<8x32xf32>
    %144 = vector.extract_strided_slice %142 {offsets = [0, 32], sizes = [8, 32], strides = [1, 1]} : vector<8x128xf32> to vector<8x32xf32>
    %145 = vector.extract_strided_slice %142 {offsets = [0, 96], sizes = [8, 32], strides = [1, 1]} : vector<8x128xf32> to vector<8x32xf32>
    %146 = vector.extract_strided_slice %137 {offsets = [0, 64], sizes = [8, 32], strides = [1, 1]} : vector<8x128xf32> to vector<8x32xf32>
    %147 = math.tanh %146 : vector<8x32xf32>
    %148 = arith.mulf %144, %132 : vector<8x32xf32>
    %149 = arith.mulf %143, %147 : vector<8x32xf32>
    %150 = arith.addf %148, %149 : vector<8x32xf32>
    %151 = math.tanh %150 : vector<8x32xf32>
    %152 = arith.mulf %145, %151 : vector<8x32xf32>
    %153 = tpu.concatenate %26, %44, %62, %80, %98, %116, %134, %152 in 0 : vector<8x32xf32>, vector<8x32xf32>, vector<8x32xf32>, vector<8x32xf32>, vector<8x32xf32>, vector<8x32xf32>, vector<8x32xf32>, vector<8x32xf32> -> vector<64x32xf32>
    %c0_25 = arith.constant 0 : index
    %c0_26 = arith.constant 0 : index
    %154 = vector.load %arg4[%c0_25, %c0_26] : memref<32x128xf32, #tpu.memory_space<vmem>>, vector<32x128xf32>
    %cst_27 = arith.constant dense<0.000000e+00> : vector<64x128xf32>
    %155 = tpu.matmul %153, %154, %cst_27 {dimension_numbers = #tpu.dot_dimension_numbers<[1], [0], [0], [1], [0, 0, 1, 1], [], []>} : vector<64x32xf32>, vector<32x128xf32>, vector<64x128xf32> -> vector<64x128xf32>
    %c0_28 = arith.constant 0 : index
    %c0_29 = arith.constant 0 : index
    %156 = vector.load %arg6[%c0_28, %c0_29] : memref<1x128xf32, #tpu.memory_space<vmem>>, vector<1x128xf32>
    %157 = vector.broadcast %156 : vector<1x128xf32> to vector<64x128xf32>
    %158 = arith.addf %155, %157 : vector<64x128xf32>
    %c0_30 = arith.constant 0 : index
    %c0_31 = arith.constant 0 : index
    %159 = vector.load %arg5[%c0_30, %c0_31] : memref<32x128xf32, #tpu.memory_space<vmem>>, vector<32x128xf32>
    %cst_32 = arith.constant 0.000000e+00 : f32
    %160 = vector.broadcast %cst_32 : f32 to vector<8x32xf32>
    %cst_33 = arith.constant 0.000000e+00 : f32
    %161 = vector.broadcast %cst_33 : f32 to vector<8x32xf32>
    %162 = vector.extract_strided_slice %158 {offsets = [0, 0], sizes = [8, 128], strides = [1, 1]} : vector<64x128xf32> to vector<8x128xf32>
    %cst_34 = arith.constant dense<0.000000e+00> : vector<8x128xf32>
    %163 = tpu.matmul %160, %159, %cst_34 {dimension_numbers = #tpu.dot_dimension_numbers<[1], [0], [0], [1], [0, 0, 1, 1], [], []>} : vector<8x32xf32>, vector<32x128xf32>, vector<8x128xf32> -> vector<8x128xf32>
    %164 = arith.addf %162, %163 : vector<8x128xf32>
    %165 = arith.negf %164 : vector<8x128xf32>
    %166 = math.exp %165 : vector<8x128xf32>
    %cst_35 = arith.constant 1.000000e+00 : f32
    %167 = vector.broadcast %cst_35 : f32 to vector<8x128xf32>
    %168 = arith.addf %167, %166 : vector<8x128xf32>
    %169 = arith.divf %167, %168 : vector<8x128xf32>
    %170 = vector.extract_strided_slice %169 {offsets = [0, 0], sizes = [8, 32], strides = [1, 1]} : vector<8x128xf32> to vector<8x32xf32>
    %171 = vector.extract_strided_slice %169 {offsets = [0, 32], sizes = [8, 32], strides = [1, 1]} : vector<8x128xf32> to vector<8x32xf32>
    %172 = vector.extract_strided_slice %169 {offsets = [0, 96], sizes = [8, 32], strides = [1, 1]} : vector<8x128xf32> to vector<8x32xf32>
    %173 = vector.extract_strided_slice %164 {offsets = [0, 64], sizes = [8, 32], strides = [1, 1]} : vector<8x128xf32> to vector<8x32xf32>
    %174 = math.tanh %173 : vector<8x32xf32>
    %175 = arith.mulf %171, %161 : vector<8x32xf32>
    %176 = arith.mulf %170, %174 : vector<8x32xf32>
    %177 = arith.addf %175, %176 : vector<8x32xf32>
    %178 = math.tanh %177 : vector<8x32xf32>
    %179 = arith.mulf %172, %178 : vector<8x32xf32>
    %180 = vector.extract_strided_slice %158 {offsets = [8, 0], sizes = [8, 128], strides = [1, 1]} : vector<64x128xf32> to vector<8x128xf32>
    %cst_36 = arith.constant dense<0.000000e+00> : vector<8x128xf32>
    %181 = tpu.matmul %179, %159, %cst_36 {dimension_numbers = #tpu.dot_dimension_numbers<[1], [0], [0], [1], [0, 0, 1, 1], [], []>} : vector<8x32xf32>, vector<32x128xf32>, vector<8x128xf32> -> vector<8x128xf32>
    %182 = arith.addf %180, %181 : vector<8x128xf32>
    %183 = arith.negf %182 : vector<8x128xf32>
    %184 = math.exp %183 : vector<8x128xf32>
    %cst_37 = arith.constant 1.000000e+00 : f32
    %185 = vector.broadcast %cst_37 : f32 to vector<8x128xf32>
    %186 = arith.addf %185, %184 : vector<8x128xf32>
    %187 = arith.divf %185, %186 : vector<8x128xf32>
    %188 = vector.extract_strided_slice %187 {offsets = [0, 0], sizes = [8, 32], strides = [1, 1]} : vector<8x128xf32> to vector<8x32xf32>
    %189 = vector.extract_strided_slice %187 {offsets = [0, 32], sizes = [8, 32], strides = [1, 1]} : vector<8x128xf32> to vector<8x32xf32>
    %190 = vector.extract_strided_slice %187 {offsets = [0, 96], sizes = [8, 32], strides = [1, 1]} : vector<8x128xf32> to vector<8x32xf32>
    %191 = vector.extract_strided_slice %182 {offsets = [0, 64], sizes = [8, 32], strides = [1, 1]} : vector<8x128xf32> to vector<8x32xf32>
    %192 = math.tanh %191 : vector<8x32xf32>
    %193 = arith.mulf %189, %177 : vector<8x32xf32>
    %194 = arith.mulf %188, %192 : vector<8x32xf32>
    %195 = arith.addf %193, %194 : vector<8x32xf32>
    %196 = math.tanh %195 : vector<8x32xf32>
    %197 = arith.mulf %190, %196 : vector<8x32xf32>
    %198 = vector.extract_strided_slice %158 {offsets = [16, 0], sizes = [8, 128], strides = [1, 1]} : vector<64x128xf32> to vector<8x128xf32>
    %cst_38 = arith.constant dense<0.000000e+00> : vector<8x128xf32>
    %199 = tpu.matmul %197, %159, %cst_38 {dimension_numbers = #tpu.dot_dimension_numbers<[1], [0], [0], [1], [0, 0, 1, 1], [], []>} : vector<8x32xf32>, vector<32x128xf32>, vector<8x128xf32> -> vector<8x128xf32>
    %200 = arith.addf %198, %199 : vector<8x128xf32>
    %201 = arith.negf %200 : vector<8x128xf32>
    %202 = math.exp %201 : vector<8x128xf32>
    %cst_39 = arith.constant 1.000000e+00 : f32
    %203 = vector.broadcast %cst_39 : f32 to vector<8x128xf32>
    %204 = arith.addf %203, %202 : vector<8x128xf32>
    %205 = arith.divf %203, %204 : vector<8x128xf32>
    %206 = vector.extract_strided_slice %205 {offsets = [0, 0], sizes = [8, 32], strides = [1, 1]} : vector<8x128xf32> to vector<8x32xf32>
    %207 = vector.extract_strided_slice %205 {offsets = [0, 32], sizes = [8, 32], strides = [1, 1]} : vector<8x128xf32> to vector<8x32xf32>
    %208 = vector.extract_strided_slice %205 {offsets = [0, 96], sizes = [8, 32], strides = [1, 1]} : vector<8x128xf32> to vector<8x32xf32>
    %209 = vector.extract_strided_slice %200 {offsets = [0, 64], sizes = [8, 32], strides = [1, 1]} : vector<8x128xf32> to vector<8x32xf32>
    %210 = math.tanh %209 : vector<8x32xf32>
    %211 = arith.mulf %207, %195 : vector<8x32xf32>
    %212 = arith.mulf %206, %210 : vector<8x32xf32>
    %213 = arith.addf %211, %212 : vector<8x32xf32>
    %214 = math.tanh %213 : vector<8x32xf32>
    %215 = arith.mulf %208, %214 : vector<8x32xf32>
    %216 = vector.extract_strided_slice %158 {offsets = [24, 0], sizes = [8, 128], strides = [1, 1]} : vector<64x128xf32> to vector<8x128xf32>
    %cst_40 = arith.constant dense<0.000000e+00> : vector<8x128xf32>
    %217 = tpu.matmul %215, %159, %cst_40 {dimension_numbers = #tpu.dot_dimension_numbers<[1], [0], [0], [1], [0, 0, 1, 1], [], []>} : vector<8x32xf32>, vector<32x128xf32>, vector<8x128xf32> -> vector<8x128xf32>
    %218 = arith.addf %216, %217 : vector<8x128xf32>
    %219 = arith.negf %218 : vector<8x128xf32>
    %220 = math.exp %219 : vector<8x128xf32>
    %cst_41 = arith.constant 1.000000e+00 : f32
    %221 = vector.broadcast %cst_41 : f32 to vector<8x128xf32>
    %222 = arith.addf %221, %220 : vector<8x128xf32>
    %223 = arith.divf %221, %222 : vector<8x128xf32>
    %224 = vector.extract_strided_slice %223 {offsets = [0, 0], sizes = [8, 32], strides = [1, 1]} : vector<8x128xf32> to vector<8x32xf32>
    %225 = vector.extract_strided_slice %223 {offsets = [0, 32], sizes = [8, 32], strides = [1, 1]} : vector<8x128xf32> to vector<8x32xf32>
    %226 = vector.extract_strided_slice %223 {offsets = [0, 96], sizes = [8, 32], strides = [1, 1]} : vector<8x128xf32> to vector<8x32xf32>
    %227 = vector.extract_strided_slice %218 {offsets = [0, 64], sizes = [8, 32], strides = [1, 1]} : vector<8x128xf32> to vector<8x32xf32>
    %228 = math.tanh %227 : vector<8x32xf32>
    %229 = arith.mulf %225, %213 : vector<8x32xf32>
    %230 = arith.mulf %224, %228 : vector<8x32xf32>
    %231 = arith.addf %229, %230 : vector<8x32xf32>
    %232 = math.tanh %231 : vector<8x32xf32>
    %233 = arith.mulf %226, %232 : vector<8x32xf32>
    %234 = vector.extract_strided_slice %158 {offsets = [32, 0], sizes = [8, 128], strides = [1, 1]} : vector<64x128xf32> to vector<8x128xf32>
    %cst_42 = arith.constant dense<0.000000e+00> : vector<8x128xf32>
    %235 = tpu.matmul %233, %159, %cst_42 {dimension_numbers = #tpu.dot_dimension_numbers<[1], [0], [0], [1], [0, 0, 1, 1], [], []>} : vector<8x32xf32>, vector<32x128xf32>, vector<8x128xf32> -> vector<8x128xf32>
    %236 = arith.addf %234, %235 : vector<8x128xf32>
    %237 = arith.negf %236 : vector<8x128xf32>
    %238 = math.exp %237 : vector<8x128xf32>
    %cst_43 = arith.constant 1.000000e+00 : f32
    %239 = vector.broadcast %cst_43 : f32 to vector<8x128xf32>
    %240 = arith.addf %239, %238 : vector<8x128xf32>
    %241 = arith.divf %239, %240 : vector<8x128xf32>
    %242 = vector.extract_strided_slice %241 {offsets = [0, 0], sizes = [8, 32], strides = [1, 1]} : vector<8x128xf32> to vector<8x32xf32>
    %243 = vector.extract_strided_slice %241 {offsets = [0, 32], sizes = [8, 32], strides = [1, 1]} : vector<8x128xf32> to vector<8x32xf32>
    %244 = vector.extract_strided_slice %241 {offsets = [0, 96], sizes = [8, 32], strides = [1, 1]} : vector<8x128xf32> to vector<8x32xf32>
    %245 = vector.extract_strided_slice %236 {offsets = [0, 64], sizes = [8, 32], strides = [1, 1]} : vector<8x128xf32> to vector<8x32xf32>
    %246 = math.tanh %245 : vector<8x32xf32>
    %247 = arith.mulf %243, %231 : vector<8x32xf32>
    %248 = arith.mulf %242, %246 : vector<8x32xf32>
    %249 = arith.addf %247, %248 : vector<8x32xf32>
    %250 = math.tanh %249 : vector<8x32xf32>
    %251 = arith.mulf %244, %250 : vector<8x32xf32>
    %252 = vector.extract_strided_slice %158 {offsets = [40, 0], sizes = [8, 128], strides = [1, 1]} : vector<64x128xf32> to vector<8x128xf32>
    %cst_44 = arith.constant dense<0.000000e+00> : vector<8x128xf32>
    %253 = tpu.matmul %251, %159, %cst_44 {dimension_numbers = #tpu.dot_dimension_numbers<[1], [0], [0], [1], [0, 0, 1, 1], [], []>} : vector<8x32xf32>, vector<32x128xf32>, vector<8x128xf32> -> vector<8x128xf32>
    %254 = arith.addf %252, %253 : vector<8x128xf32>
    %255 = arith.negf %254 : vector<8x128xf32>
    %256 = math.exp %255 : vector<8x128xf32>
    %cst_45 = arith.constant 1.000000e+00 : f32
    %257 = vector.broadcast %cst_45 : f32 to vector<8x128xf32>
    %258 = arith.addf %257, %256 : vector<8x128xf32>
    %259 = arith.divf %257, %258 : vector<8x128xf32>
    %260 = vector.extract_strided_slice %259 {offsets = [0, 0], sizes = [8, 32], strides = [1, 1]} : vector<8x128xf32> to vector<8x32xf32>
    %261 = vector.extract_strided_slice %259 {offsets = [0, 32], sizes = [8, 32], strides = [1, 1]} : vector<8x128xf32> to vector<8x32xf32>
    %262 = vector.extract_strided_slice %259 {offsets = [0, 96], sizes = [8, 32], strides = [1, 1]} : vector<8x128xf32> to vector<8x32xf32>
    %263 = vector.extract_strided_slice %254 {offsets = [0, 64], sizes = [8, 32], strides = [1, 1]} : vector<8x128xf32> to vector<8x32xf32>
    %264 = math.tanh %263 : vector<8x32xf32>
    %265 = arith.mulf %261, %249 : vector<8x32xf32>
    %266 = arith.mulf %260, %264 : vector<8x32xf32>
    %267 = arith.addf %265, %266 : vector<8x32xf32>
    %268 = math.tanh %267 : vector<8x32xf32>
    %269 = arith.mulf %262, %268 : vector<8x32xf32>
    %270 = vector.extract_strided_slice %158 {offsets = [48, 0], sizes = [8, 128], strides = [1, 1]} : vector<64x128xf32> to vector<8x128xf32>
    %cst_46 = arith.constant dense<0.000000e+00> : vector<8x128xf32>
    %271 = tpu.matmul %269, %159, %cst_46 {dimension_numbers = #tpu.dot_dimension_numbers<[1], [0], [0], [1], [0, 0, 1, 1], [], []>} : vector<8x32xf32>, vector<32x128xf32>, vector<8x128xf32> -> vector<8x128xf32>
    %272 = arith.addf %270, %271 : vector<8x128xf32>
    %273 = arith.negf %272 : vector<8x128xf32>
    %274 = math.exp %273 : vector<8x128xf32>
    %cst_47 = arith.constant 1.000000e+00 : f32
    %275 = vector.broadcast %cst_47 : f32 to vector<8x128xf32>
    %276 = arith.addf %275, %274 : vector<8x128xf32>
    %277 = arith.divf %275, %276 : vector<8x128xf32>
    %278 = vector.extract_strided_slice %277 {offsets = [0, 0], sizes = [8, 32], strides = [1, 1]} : vector<8x128xf32> to vector<8x32xf32>
    %279 = vector.extract_strided_slice %277 {offsets = [0, 32], sizes = [8, 32], strides = [1, 1]} : vector<8x128xf32> to vector<8x32xf32>
    %280 = vector.extract_strided_slice %277 {offsets = [0, 96], sizes = [8, 32], strides = [1, 1]} : vector<8x128xf32> to vector<8x32xf32>
    %281 = vector.extract_strided_slice %272 {offsets = [0, 64], sizes = [8, 32], strides = [1, 1]} : vector<8x128xf32> to vector<8x32xf32>
    %282 = math.tanh %281 : vector<8x32xf32>
    %283 = arith.mulf %279, %267 : vector<8x32xf32>
    %284 = arith.mulf %278, %282 : vector<8x32xf32>
    %285 = arith.addf %283, %284 : vector<8x32xf32>
    %286 = math.tanh %285 : vector<8x32xf32>
    %287 = arith.mulf %280, %286 : vector<8x32xf32>
    %288 = vector.extract_strided_slice %158 {offsets = [56, 0], sizes = [8, 128], strides = [1, 1]} : vector<64x128xf32> to vector<8x128xf32>
    %cst_48 = arith.constant dense<0.000000e+00> : vector<8x128xf32>
    %289 = tpu.matmul %287, %159, %cst_48 {dimension_numbers = #tpu.dot_dimension_numbers<[1], [0], [0], [1], [0, 0, 1, 1], [], []>} : vector<8x32xf32>, vector<32x128xf32>, vector<8x128xf32> -> vector<8x128xf32>
    %290 = arith.addf %288, %289 : vector<8x128xf32>
    %291 = arith.negf %290 : vector<8x128xf32>
    %292 = math.exp %291 : vector<8x128xf32>
    %cst_49 = arith.constant 1.000000e+00 : f32
    %293 = vector.broadcast %cst_49 : f32 to vector<8x128xf32>
    %294 = arith.addf %293, %292 : vector<8x128xf32>
    %295 = arith.divf %293, %294 : vector<8x128xf32>
    %296 = vector.extract_strided_slice %295 {offsets = [0, 0], sizes = [8, 32], strides = [1, 1]} : vector<8x128xf32> to vector<8x32xf32>
    %297 = vector.extract_strided_slice %295 {offsets = [0, 32], sizes = [8, 32], strides = [1, 1]} : vector<8x128xf32> to vector<8x32xf32>
    %298 = vector.extract_strided_slice %295 {offsets = [0, 96], sizes = [8, 32], strides = [1, 1]} : vector<8x128xf32> to vector<8x32xf32>
    %299 = vector.extract_strided_slice %290 {offsets = [0, 64], sizes = [8, 32], strides = [1, 1]} : vector<8x128xf32> to vector<8x32xf32>
    %300 = math.tanh %299 : vector<8x32xf32>
    %301 = arith.mulf %297, %285 : vector<8x32xf32>
    %302 = arith.mulf %296, %300 : vector<8x32xf32>
    %303 = arith.addf %301, %302 : vector<8x32xf32>
    %304 = math.tanh %303 : vector<8x32xf32>
    %305 = arith.mulf %298, %304 : vector<8x32xf32>
    %306 = tpu.concatenate %179, %197, %215, %233, %251, %269, %287, %305 in 0 : vector<8x32xf32>, vector<8x32xf32>, vector<8x32xf32>, vector<8x32xf32>, vector<8x32xf32>, vector<8x32xf32>, vector<8x32xf32>, vector<8x32xf32> -> vector<64x32xf32>
    %c0_50 = arith.constant 0 : index
    %c0_51 = arith.constant 0 : index
    %307 = vector.load %arg7[%c0_50, %c0_51] : memref<32x128xf32, #tpu.memory_space<vmem>>, vector<32x128xf32>
    %cst_52 = arith.constant dense<0.000000e+00> : vector<64x128xf32>
    %308 = tpu.matmul %306, %307, %cst_52 {dimension_numbers = #tpu.dot_dimension_numbers<[1], [0], [0], [1], [0, 0, 1, 1], [], []>} : vector<64x32xf32>, vector<32x128xf32>, vector<64x128xf32> -> vector<64x128xf32>
    %c0_53 = arith.constant 0 : index
    %c0_54 = arith.constant 0 : index
    %309 = vector.load %arg8[%c0_53, %c0_54] : memref<1x128xf32, #tpu.memory_space<vmem>>, vector<1x128xf32>
    %310 = vector.broadcast %309 : vector<1x128xf32> to vector<64x128xf32>
    %311 = arith.addf %308, %310 : vector<64x128xf32>
    %c0_55 = arith.constant 0 : index
    %c0_56 = arith.constant 0 : index
    %312 = vector.load %arg9[%c0_55, %c0_56] : memref<64x128xf32, #tpu.memory_space<vmem>>, vector<64x128xf32>
    tpu.vector_store %arg9[%c0_55, %c0_56], %311 {strides = array<i32>} : memref<64x128xf32, #tpu.memory_space<vmem>>, vector<64x128xf32>,
    return
  }
}

</mosaic_0001>

<llo_original>
// kernel: tpu_custom_call.1
$region0: #{tpu_custom_call.1}
  #allocation0 [shape = 'u32[]', space=smem, size = 0x4, offset = 0x4, fixed_abs, tag = 'smem constant byte address 0x4 - core index']
  #allocation1 [shape = 'u32[144,128]{1,0:T(1,128)}', space=vmem, size = 0x12000, scoped, tag = 'internal scratch']
  %s0 = inlined_call_operand.vmem [shape: f32[64,16], index: 0, kind: input, shape index: {}]
  %s1 = inlined_call_operand.vmem [shape: f32[16,128], index: 1, kind: input, shape index: {}]
  %s2 = inlined_call_operand.vmem [shape: f32[32,128], index: 2, kind: input, shape index: {}]
  %s3 = inlined_call_operand.vmem [shape: f32[1,128], index: 3, kind: input, shape index: {}]
  %s4 = inlined_call_operand.vmem [shape: f32[32,128], index: 4, kind: input, shape index: {}]
  %s5 = inlined_call_operand.hbm [shape: f32[32,128], index: 5, kind: input, shape index: {}]
  %s6 = inlined_call_operand.vmem [shape: f32[1,128], index: 6, kind: input, shape index: {}]
  %s7 = inlined_call_operand.hbm [shape: f32[32,128], index: 7, kind: input, shape index: {}]
  %s8 = inlined_call_operand.vmem [shape: f32[1,128], index: 8, kind: input, shape index: {}]
  %s9 = inlined_call_operand.hbm [shape: f32[64,128], index: 9, kind: output, shape index: {}]
  %s10 = sld [smem:[#allocation0]]
  $region54: #{tpu_custom_call.1} parent=0
    _
  %s12 = ssub.s32 1, %s10
  %s13 = scalar_select 0, %s12, %s10
  $region1: #{tpu_custom_call.1} parent=0
    #allocation2 [shape = 'u8[16384]{0}', space=vmem, size = 0x4000, scoped, tag = 'input window, operand 5, single buffered']
    #allocation3 [shape = 's32[1]{0}', space=sflag, size = 0x4, scoped, tag = 'scoped memory for tpu_custom_call.1']
    #allocation4 [shape = 's32[1]{0}', space=sflag, size = 0x4, scoped, tag = 'scoped memory for tpu_custom_call.1']
    #allocation5 [shape = 'u8[16384]{0}', space=vmem, size = 0x4000, scoped, tag = 'input window, operand 7, single buffered']
    #allocation6 [shape = 's32[1]{0}', space=sflag, size = 0x4, scoped, tag = 'scoped memory for tpu_custom_call.1']
    #allocation7 [shape = 'u8[32768]{0}', space=vmem, size = 0x8000, scoped, tag = 'output window, operand 0, single buffered']
    %14 = vsyncpa [#allocation3], 0
    %15 = vsyncpa [#allocation6], 0
    %16 = vsyncpa [#allocation4], 0
    // Predicated region
    $region2: #{tpu_custom_call.1} parent=1 // pred_check
      _
    $region3: #{tpu_custom_call.1} parent=1 // pred_check_branch
      %18 = sbr.rel (0) target = $region5
    $region4: #{tpu_custom_call.1} parent=1 // pred_region
      _
    $region5: #{tpu_custom_call.1} parent=1 // pred_fallthru
      _
    // Predicated region
    $region6: #{tpu_custom_call.1} parent=1 // pred_check
      _
    $region7: #{tpu_custom_call.1} parent=1 // pred_check_branch
      %20 = sbr.rel (0) target = $region9
    $region8: #{tpu_custom_call.1} parent=1 // pred_region
      _
    $region9: #{tpu_custom_call.1} parent=1 // pred_fallthru
      _
    // Predicated region
    $region10: #{tpu_custom_call.1} parent=1 // pred_check
      _
    $region11: #{tpu_custom_call.1} parent=1 // pred_check_branch
      %22 = sbr.rel (0) target = $region13
    $region12: #{tpu_custom_call.1} parent=1 // pred_region
      _
    $region13: #{tpu_custom_call.1} parent=1 // pred_fallthru
      _
    // Predicated region
    $region14: #{tpu_custom_call.1} parent=1 // pred_check
      _
    $region15: #{tpu_custom_call.1} parent=1 // pred_check_branch
      %24 = sbr.rel (0) target = $region17
    $region16: #{tpu_custom_call.1} parent=1 // pred_region
      _
    $region17: #{tpu_custom_call.1} parent=1 // pred_fallthru
      _
    // Predicated region
    $region18: #{tpu_custom_call.1} parent=1 // pred_check
      _
    $region19: #{tpu_custom_call.1} parent=1 // pred_check_branch
      %26 = sbr.rel (0) target = $region21
    $region20: #{tpu_custom_call.1} parent=1 // pred_region
      _
    $region21: #{tpu_custom_call.1} parent=1 // pred_fallthru
      _
    // Predicated region
    $region22: #{tpu_custom_call.1} parent=1 // pred_check
      _
    $region23: #{tpu_custom_call.1} parent=1 // pred_check_branch
      %28 = sbr.rel (0) target = $region25
    $region24: #{tpu_custom_call.1} parent=1 // pred_region
      %s30 = ssub.s32 512, 512
      %31 = vsyncadd [#allocation3], %s30
      %s32 = sshll.u32 [#allocation2], 4
      %s33 = int_to_ptr.vmem [resolvable:$true] %s32
      %38 = dma.hbm_to_vmem [thread:$0]  %s5, 512, %s33, [#allocation3], 128, 128, 8
    $region25: #{tpu_custom_call.1} parent=1 // pred_fallthru
      _
    // Predicated region
    $region26: #{tpu_custom_call.1} parent=1 // pred_check
      _
    $region27: #{tpu_custom_call.1} parent=1 // pred_check_branch
      %40 = sbr.rel (0) target = $region29
    $region28: #{tpu_custom_call.1} parent=1 // pred_region
      _
    $region29: #{tpu_custom_call.1} parent=1 // pred_fallthru
      _
    // Predicated region
    $region30: #{tpu_custom_call.1} parent=1 // pred_check
      _
    $region31: #{tpu_custom_call.1} parent=1 // pred_check_branch
      %42 = sbr.rel (0) target = $region33
    $region32: #{tpu_custom_call.1} parent=1 // pred_region
      %s44 = ssub.s32 512, 512
      %45 = vsyncadd [#allocation6], %s44
      %s46 = sshll.u32 [#allocation5], 4
      %s47 = int_to_ptr.vmem [resolvable:$true] %s46
      %52 = dma.hbm_to_vmem [thread:$0]  %s7, 512, %s47, [#allocation6], 128, 128, 8
    $region33: #{tpu_custom_call.1} parent=1 // pred_fallthru
      _
    // Predicated region
    $region34: #{tpu_custom_call.1} parent=1 // pred_check
      _
    $region35: #{tpu_custom_call.1} parent=1 // pred_check_branch
      %54 = sbr.rel (0) target = $region37
    $region36: #{tpu_custom_call.1} parent=1 // pred_region
      _
    $region37: #{tpu_custom_call.1} parent=1 // pred_fallthru
      _
    // Predicated region
    $region38: #{tpu_custom_call.1} parent=1 // pred_check
      _
    $region39: #{tpu_custom_call.1} parent=1 // pred_check_branch
      %56 = sbr.rel (0) target = $region41
    $region40: #{tpu_custom_call.1} parent=1 // pred_region
      %57 = dma.done [#allocation3], 512
    $region41: #{tpu_custom_call.1} parent=1 // pred_fallthru
      _
    // Predicated region
    $region42: #{tpu_custom_call.1} parent=1 // pred_check
      _
    $region43: #{tpu_custom_call.1} parent=1 // pred_check_branch
      %59 = sbr.rel (0) target = $region45
    $region44: #{tpu_custom_call.1} parent=1 // pred_region
      %60 = dma.done [#allocation6], 512
    $region45: #{tpu_custom_call.1} parent=1 // pred_fallthru
      _
    %v61 = vld [vmem:[%s0] sm:$0xff]
    %v62 = vld [vmem:[%s0 + $0x8] sm:$0xff]
    %v63 = vld [vmem:[%s0 + $0x10] sm:$0xff]
    %v64 = vld [vmem:[%s0 + $0x18] sm:$0xff]
    %v65 = vld [vmem:[%s0 + $0x20] sm:$0xff]
    %v66 = vld [vmem:[%s0 + $0x28] sm:$0xff]
    %v67 = vld [vmem:[%s0 + $0x30] sm:$0xff]
    %v68 = vld [vmem:[%s0 + $0x38] sm:$0xff]
    %v69 = vld [vmem:[%s1] sm:$0xff]
    %v70 = vld [vmem:[%s1 + $0x8] sm:$0xff]
    %v71 = vld [vmem:[%s3] sm:$0x1]
    %v73 = vlaneseq
    %v74 = vshrl.u32 %v73, 7
    %v75 = vsub.s32 0, %v74
    %v76 = vrot.slane %v71, %v75
    %vm78 = vcmask 130048
    %v80 = vsel %vm78, %v61, 0
    %v83 = vsel %vm78, %v62, 0
    %v86 = vsel %vm78, %v63, 0
    %v89 = vsel %vm78, %v64, 0
    %v92 = vsel %vm78, %v65, 0
    %v95 = vsel %vm78, %v66, 0
    %v98 = vsel %vm78, %v67, 0
    %v101 = vsel %vm78, %v68, 0
    %103 = vmatprep.subr.mxu0 0.0
    %104 = vmatpush1.msra.mxu0 0.0
    %105 = vmatprep.subr.mxu0 0.0
    %106 = vmatpush1.msra.mxu0 0.0
    %107 = vmatprep.subr.mxu0 0.0
    %108 = vmatpush1.msra.mxu0 0.0
    %109 = vmatprep.subr.mxu0 0.0
    %110 = vmatpush1.msra.mxu0 0.0
    %111 = vmatprep.subr.mxu0 0.0
    %112 = vmatpush1.msra.mxu0 0.0
    %113 = vmatprep.subr.mxu0 0.0
    %114 = vmatpush1.msra.mxu0 0.0
    %115 = vmatprep.subr.mxu0 0.0
    %116 = vmatpush1.msra.mxu0 0.0
    %117 = vmatprep.subr.mxu0 0.0
    %118 = vmatpush1.msra.mxu0 0.0
    %119 = vmatprep.subr.mxu0 0.0
    %120 = vmatpush1.msra.mxu0 0.0
    %121 = vmatprep.subr.mxu0 0.0
    %122 = vmatpush1.msra.mxu0 0.0
    %123 = vmatprep.subr.mxu0 0.0
    %124 = vmatpush1.msra.mxu0 0.0
    %125 = vmatprep.subr.mxu0 0.0
    %126 = vmatpush1.msra.mxu0 0.0
    %127 = vmatprep.subr.mxu0 0.0
    %128 = vmatpush1.msra.mxu0 0.0
    %129 = vmatprep.subr.mxu0 0.0
    %130 = vmatpush1.msra.mxu0 0.0
    %131 = vmatprep.subr.mxu0 0.0
    %132 = vmatpush1.msra.mxu0 %v70
    %133 = vmatprep.subr.mxu0 0.0
    %134 = vmatpush1.msra.mxu0 %v69
    %135 = vmatprep.subr.mxu0 0.0
    %136 = vmatpush2.msra.mxu0 0.0
    %137 = vmatprep.subr.mxu0 0.0
    %138 = vmatpush2.msra.mxu0 0.0
    %139 = vmatprep.subr.mxu0 0.0
    %140 = vmatpush2.msra.mxu0 0.0
    %141 = vmatprep.subr.mxu0 0.0
    %142 = vmatpush2.msra.mxu0 0.0
    %143 = vmatprep.subr.mxu0 0.0
    %144 = vmatpush2.msra.mxu0 0.0
    %145 = vmatprep.subr.mxu0 0.0
    %146 = vmatpush2.msra.mxu0 0.0
    %147 = vmatprep.subr.mxu0 0.0
    %148 = vmatpush2.msra.mxu0 0.0
    %149 = vmatprep.subr.mxu0 0.0
    %150 = vmatpush2.msra.mxu0 0.0
    %151 = vmatprep.subr.mxu0 0.0
    %152 = vmatpush2.msra.mxu0 0.0
    %153 = vmatprep.subr.mxu0 0.0
    %154 = vmatpush2.msra.mxu0 0.0
    %155 = vmatprep.subr.mxu0 0.0
    %156 = vmatpush2.msra.mxu0 0.0
    %157 = vmatprep.subr.mxu0 0.0
    %158 = vmatpush2.msra.mxu0 0.0
    %159 = vmatprep.subr.mxu0 0.0
    %160 = vmatpush2.msra.mxu0 0.0
    %161 = vmatprep.subr.mxu0 0.0
    %162 = vmatpush2.msra.mxu0 0.0
    %163 = vmatprep.subr.mxu0 0.0
    %164 = vmatpush2.msra.mxu0 0.0
    %165 = vmatprep.subr.mxu0 0.0
    %166 = vmatpush2.msra.mxu0 0.0
    %167 = vmatprep.mubr.f32.mxu0 0.0
    %168 = vmatmul.mubr.f32.gmra.mxu0 %v80
    %v169 = vpop.f32.mrf.mxu0
    %v170 = vadd.f32 %v76, %v169
    %v171 = vpop.f32.mrf.mxu0
    %172 = vmatprep.mubr.f32.mxu0 0.0
    %173 = vmatmul.mubr.f32.gmra.mxu0 %v83
    %v174 = vpop.f32.mrf.mxu0
    %v175 = vadd.f32 %v76, %v174
    %v176 = vpop.f32.mrf.mxu0
    %177 = vmatprep.mubr.f32.mxu0 0.0
    %178 = vmatmul.mubr.f32.gmra.mxu0 %v86
    %v179 = vpop.f32.mrf.mxu0
    %v180 = vadd.f32 %v76, %v179
    %v181 = vpop.f32.mrf.mxu0
    %182 = vmatprep.mubr.f32.mxu0 0.0
    %183 = vmatmul.mubr.f32.gmra.mxu0 %v89
    %v184 = vpop.f32.mrf.mxu0
    %v185 = vadd.f32 %v76, %v184
    %v186 = vpop.f32.mrf.mxu0
    %187 = vmatprep.mubr.f32.mxu0 0.0
    %188 = vmatmul.mubr.f32.gmra.mxu0 %v92
    %v189 = vpop.f32.mrf.mxu0
    %v190 = vadd.f32 %v76, %v189
    %v191 = vpop.f32.mrf.mxu0
    %192 = vmatprep.mubr.f32.mxu0 0.0
    %193 = vmatmul.mubr.f32.gmra.mxu0 %v95
    %v194 = vpop.f32.mrf.mxu0
    %v195 = vadd.f32 %v76, %v194
    %v196 = vpop.f32.mrf.mxu0
    %197 = vmatprep.mubr.f32.mxu0 0.0
    %198 = vmatmul.mubr.f32.gmra.mxu0 %v98
    %v199 = vpop.f32.mrf.mxu0
    %v200 = vadd.f32 %v76, %v199
    %v201 = vpop.f32.mrf.mxu0
    %202 = vmatprep.mubr.f32.mxu0 0.0
    %203 = vmatmul.mubr.f32.gmra.mxu0 %v101
    %v204 = vpop.f32.mrf.mxu0
    %v205 = vadd.f32 %v76, %v204
    %v206 = vpop.f32.mrf.mxu0
    %207 = vdwg.mxu0
    %v208 = vld [vmem:[%s2] sm:$0xff]
    %v209 = vld [vmem:[%s2 + $0x8] sm:$0xff]
    %v210 = vld [vmem:[%s2 + $0x10] sm:$0xff]
    %v211 = vld [vmem:[%s2 + $0x18] sm:$0xff]
    %vm212 = vcmask 261120
    %v214 = vsel %vm212, 0.0, 0
    %216 = vmatprep.subr.mxu0 0.0
    %217 = vmatpush1.msra.mxu0 0.0
    %218 = vmatprep.subr.mxu0 0.0
    %219 = vmatpush1.msra.mxu0 0.0
    %220 = vmatprep.subr.mxu0 0.0
    %221 = vmatpush1.msra.mxu0 0.0
    %222 = vmatprep.subr.mxu0 0.0
    %223 = vmatpush1.msra.mxu0 0.0
    %224 = vmatprep.subr.mxu0 0.0
    %225 = vmatpush1.msra.mxu0 0.0
    %226 = vmatprep.subr.mxu0 0.0
    %227 = vmatpush1.msra.mxu0 0.0
    %228 = vmatprep.subr.mxu0 0.0
    %229 = vmatpush1.msra.mxu0 0.0
    %230 = vmatprep.subr.mxu0 0.0
    %231 = vmatpush1.msra.mxu0 0.0
    %232 = vmatprep.subr.mxu0 0.0
    %233 = vmatpush1.msra.mxu0 0.0
    %234 = vmatprep.subr.mxu0 0.0
    %235 = vmatpush1.msra.mxu0 0.0
    %236 = vmatprep.subr.mxu0 0.0
    %237 = vmatpush1.msra.mxu0 0.0
    %238 = vmatprep.subr.mxu0 0.0
    %239 = vmatpush1.msra.mxu0 0.0
    %240 = vmatprep.subr.mxu0 0.0
    %241 = vmatpush1.msra.mxu0 %v211
    %242 = vmatprep.subr.mxu0 0.0
    %243 = vmatpush1.msra.mxu0 %v210
    %244 = vmatprep.subr.mxu0 0.0
    %245 = vmatpush1.msra.mxu0 %v209
    %246 = vmatprep.subr.mxu0 0.0
    %247 = vmatpush1.msra.mxu0 %v208
    %248 = vmatprep.subr.mxu0 0.0
    %249 = vmatpush2.msra.mxu0 0.0
    %250 = vmatprep.subr.mxu0 0.0
    %251 = vmatpush2.msra.mxu0 0.0
    %252 = vmatprep.subr.mxu0 0.0
    %253 = vmatpush2.msra.mxu0 0.0
    %254 = vmatprep.subr.mxu0 0.0
    %255 = vmatpush2.msra.mxu0 0.0
    %256 = vmatprep.subr.mxu0 0.0
    %257 = vmatpush2.msra.mxu0 0.0
    %258 = vmatprep.subr.mxu0 0.0
    %259 = vmatpush2.msra.mxu0 0.0
    %260 = vmatprep.subr.mxu0 0.0
    %261 = vmatpush2.msra.mxu0 0.0
    %262 = vmatprep.subr.mxu0 0.0
    %263 = vmatpush2.msra.mxu0 0.0
    %264 = vmatprep.subr.mxu0 0.0
    %265 = vmatpush2.msra.mxu0 0.0
    %266 = vmatprep.subr.mxu0 0.0
    %267 = vmatpush2.msra.mxu0 0.0
    %268 = vmatprep.subr.mxu0 0.0
    %269 = vmatpush2.msra.mxu0 0.0
    %270 = vmatprep.subr.mxu0 0.0
    %271 = vmatpush2.msra.mxu0 0.0
    %272 = vmatprep.subr.mxu0 0.0
    %273 = vmatpush2.msra.mxu0 0.0
    %274 = vmatprep.subr.mxu0 0.0
    %275 = vmatpush2.msra.mxu0 0.0
    %276 = vmatprep.subr.mxu0 0.0
    %277 = vmatpush2.msra.mxu0 0.0
    %278 = vmatprep.subr.mxu0 0.0
    %279 = vmatpush2.msra.mxu0 0.0
    %280 = vmatprep.mubr.f32.mxu0 0.0
    %281 = vmatmul.mubr.f32.gmra.mxu0 %v214
    %v282 = vpop.f32.mrf.mxu0
    %v283 = vadd.f32 0.0, %v282
    %v284 = vpop.f32.mrf.mxu0
    %285 = vdwg.mxu0
    %v286 = vadd.f32 %v170, %v283
    %v287 = vxor.u32 %v286, 2147483648
    %v288 = vmul.f32 %v287, 1.442695
    %v289 = vpow.pop %v288
    %v290 = vadd.f32 %v289, 1.0
    %v291 = vrcp.pop %v290
    %v292 = vmul.f32 1.0, %v291
    %v293 = vtanh.pop %v286
    %v294 = vmul.f32 %v292, 0.0
    %296 = vrot.lane.b32.xlu0 %v293, 64
    %v297 = vpop.permute.xlu0 %296
    %v299 = vmul.f32 %v292, %v297
    %301 = vrot.lane.b32.xlu0 %v299, 32
    %v302 = vpop.permute.xlu0 %301
    %v304 = vadd.f32 %v294, %v302
    %v305 = vtanh.pop %v304
    %307 = vrot.lane.b32.xlu0 %v305, 64
    %v308 = vpop.permute.xlu0 %307
    %v310 = vmul.f32 %v292, %v308
    %312 = vrot.lane.b32.xlu0 %v310, 32
    %v313 = vpop.permute.xlu0 %312
    %v314 = vsel %vm212, %v313, 0
    %316 = vmatprep.subr.mxu0 0.0
    %317 = vmatpush1.msra.mxu0 0.0
    %318 = vmatprep.subr.mxu0 0.0
    %319 = vmatpush1.msra.mxu0 0.0
    %320 = vmatprep.subr.mxu0 0.0
    %321 = vmatpush1.msra.mxu0 0.0
    %322 = vmatprep.subr.mxu0 0.0
    %323 = vmatpush1.msra.mxu0 0.0
    %324 = vmatprep.subr.mxu0 0.0
    %325 = vmatpush1.msra.mxu0 0.0
    %326 = vmatprep.subr.mxu0 0.0
    %327 = vmatpush1.msra.mxu0 0.0
    %328 = vmatprep.subr.mxu0 0.0
    %329 = vmatpush1.msra.mxu0 0.0
    %330 = vmatprep.subr.mxu0 0.0
    %331 = vmatpush1.msra.mxu0 0.0
    %332 = vmatprep.subr.mxu0 0.0
    %333 = vmatpush1.msra.mxu0 0.0
    %334 = vmatprep.subr.mxu0 0.0
    %335 = vmatpush1.msra.mxu0 0.0
    %336 = vmatprep.subr.mxu0 0.0
    %337 = vmatpush1.msra.mxu0 0.0
    %338 = vmatprep.subr.mxu0 0.0
    %339 = vmatpush1.msra.mxu0 0.0
    %340 = vmatprep.subr.mxu0 0.0
    %341 = vmatpush1.msra.mxu0 %v211
    %342 = vmatprep.subr.mxu0 0.0
    %343 = vmatpush1.msra.mxu0 %v210
    %344 = vmatprep.subr.mxu0 0.0
    %345 = vmatpush1.msra.mxu0 %v209
    %346 = vmatprep.subr.mxu0 0.0
    %347 = vmatpush1.msra.mxu0 %v208
    %348 = vmatprep.subr.mxu0 0.0
    %349 = vmatpush2.msra.mxu0 0.0
    %350 = vmatprep.subr.mxu0 0.0
    %351 = vmatpush2.msra.mxu0 0.0
    %352 = vmatprep.subr.mxu0 0.0
    %353 = vmatpush2.msra.mxu0 0.0
    %354 = vmatprep.subr.mxu0 0.0
    %355 = vmatpush2.msra.mxu0 0.0
    %356 = vmatprep.subr.mxu0 0.0
    %357 = vmatpush2.msra.mxu0 0.0
    %358 = vmatprep.subr.mxu0 0.0
    %359 = vmatpush2.msra.mxu0 0.0
    %360 = vmatprep.subr.mxu0 0.0
    %361 = vmatpush2.msra.mxu0 0.0
    %362 = vmatprep.subr.mxu0 0.0
    %363 = vmatpush2.msra.mxu0 0.0
    %364 = vmatprep.subr.mxu0 0.0
    %365 = vmatpush2.msra.mxu0 0.0
    %366 = vmatprep.subr.mxu0 0.0
    %367 = vmatpush2.msra.mxu0 0.0
    %368 = vmatprep.subr.mxu0 0.0
    %369 = vmatpush2.msra.mxu0 0.0
    %370 = vmatprep.subr.mxu0 0.0
    %371 = vmatpush2.msra.mxu0 0.0
    %372 = vmatprep.subr.mxu0 0.0
    %373 = vmatpush2.msra.mxu0 0.0
    %374 = vmatprep.subr.mxu0 0.0
    %375 = vmatpush2.msra.mxu0 0.0
    %376 = vmatprep.subr.mxu0 0.0
    %377 = vmatpush2.msra.mxu0 0.0
    %378 = vmatprep.subr.mxu0 0.0
    %379 = vmatpush2.msra.mxu0 0.0
    %380 = vmatprep.mubr.f32.mxu0 0.0
    %381 = vmatmul.mubr.f32.gmra.mxu0 %v314
    %v382 = vpop.f32.mrf.mxu0
    %v383 = vadd.f32 0.0, %v382
    %v384 = vpop.f32.mrf.mxu0
    %385 = vdwg.mxu0
    %v386 = vadd.f32 %v175, %v383
    %v387 = vxor.u32 %v386, 2147483648
    %v388 = vmul.f32 %v387, 1.442695
    %v389 = vpow.pop %v388
    %v390 = vadd.f32 %v389, 1.0
    %v391 = vrcp.pop %v390
    %v392 = vmul.f32 1.0, %v391
    %v393 = vtanh.pop %v386
    %v394 = vmul.f32 %v392, %v304
    %396 = vrot.lane.b32.xlu0 %v393, 64
    %v397 = vpop.permute.xlu0 %396
    %v399 = vmul.f32 %v392, %v397
    %401 = vrot.lane.b32.xlu0 %v399, 32
    %v402 = vpop.permute.xlu0 %401
    %v404 = vadd.f32 %v394, %v402
    %v405 = vtanh.pop %v404
    %407 = vrot.lane.b32.xlu0 %v405, 64
    %v408 = vpop.permute.xlu0 %407
    %v410 = vmul.f32 %v392, %v408
    %412 = vrot.lane.b32.xlu0 %v410, 32
    %v413 = vpop.permute.xlu0 %412
    %v414 = vsel %vm212, %v413, 0
    %416 = vmatprep.subr.mxu0 0.0
    %417 = vmatpush1.msra.mxu0 0.0
    %418 = vmatprep.subr.mxu0 0.0
    %419 = vmatpush1.msra.mxu0 0.0
    %420 = vmatprep.subr.mxu0 0.0
    %421 = vmatpush1.msra.mxu0 0.0
    %422 = vmatprep.subr.mxu0 0.0
    %423 = vmatpush1.msra.mxu0 0.0
    %424 = vmatprep.subr.mxu0 0.0
    %425 = vmatpush1.msra.mxu0 0.0
    %426 = vmatprep.subr.mxu0 0.0
    %427 = vmatpush1.msra.mxu0 0.0
    %428 = vmatprep.subr.mxu0 0.0
    %429 = vmatpush1.msra.mxu0 0.0
    %430 = vmatprep.subr.mxu0 0.0
    %431 = vmatpush1.msra.mxu0 0.0
    %432 = vmatprep.subr.mxu0 0.0
    %433 = vmatpush1.msra.mxu0 0.0
    %434 = vmatprep.subr.mxu0 0.0
    %435 = vmatpush1.msra.mxu0 0.0
    %436 = vmatprep.subr.mxu0 0.0
    %437 = vmatpush1.msra.mxu0 0.0
    %438 = vmatprep.subr.mxu0 0.0
    %439 = vmatpush1.msra.mxu0 0.0
    %440 = vmatprep.subr.mxu0 0.0
    %441 = vmatpush1.msra.mxu0 %v211
    %442 = vmatprep.subr.mxu0 0.0
    %443 = vmatpush1.msra.mxu0 %v210
    %444 = vmatprep.subr.mxu0 0.0
    %445 = vmatpush1.msra.mxu0 %v209
    %446 = vmatprep.subr.mxu0 0.0
    %447 = vmatpush1.msra.mxu0 %v208
    %448 = vmatprep.subr.mxu0 0.0
    %449 = vmatpush2.msra.mxu0 0.0
    %450 = vmatprep.subr.mxu0 0.0
    %451 = vmatpush2.msra.mxu0 0.0
    %452 = vmatprep.subr.mxu0 0.0
    %453 = vmatpush2.msra.mxu0 0.0
    %454 = vmatprep.subr.mxu0 0.0
    %455 = vmatpush2.msra.mxu0 0.0
    %456 = vmatprep.subr.mxu0 0.0
    %457 = vmatpush2.msra.mxu0 0.0
    %458 = vmatprep.subr.mxu0 0.0
    %459 = vmatpush2.msra.mxu0 0.0
    %460 = vmatprep.subr.mxu0 0.0
    %461 = vmatpush2.msra.mxu0 0.0
    %462 = vmatprep.subr.mxu0 0.0
    %463 = vmatpush2.msra.mxu0 0.0
    %464 = vmatprep.subr.mxu0 0.0
    %465 = vmatpush2.msra.mxu0 0.0
    %466 = vmatprep.subr.mxu0 0.0
    %467 = vmatpush2.msra.mxu0 0.0
    %468 = vmatprep.subr.mxu0 0.0
    %469 = vmatpush2.msra.mxu0 0.0
    %470 = vmatprep.subr.mxu0 0.0
    %471 = vmatpush2.msra.mxu0 0.0
    %472 = vmatprep.subr.mxu0 0.0
    %473 = vmatpush2.msra.mxu0 0.0
    %474 = vmatprep.subr.mxu0 0.0
    %475 = vmatpush2.msra.mxu0 0.0
    %476 = vmatprep.subr.mxu0 0.0
    %477 = vmatpush2.msra.mxu0 0.0
    %478 = vmatprep.subr.mxu0 0.0
    %479 = vmatpush2.msra.mxu0 0.0
    %480 = vmatprep.mubr.f32.mxu0 0.0
    %481 = vmatmul.mubr.f32.gmra.mxu0 %v414
    %v482 = vpop.f32.mrf.mxu0
    %v483 = vadd.f32 0.0, %v482
    %v484 = vpop.f32.mrf.mxu0
    %485 = vdwg.mxu0
    %v486 = vadd.f32 %v180, %v483
    %v487 = vxor.u32 %v486, 2147483648
    %v488 = vmul.f32 %v487, 1.442695
    %v489 = vpow.pop %v488
    %v490 = vadd.f32 %v489, 1.0
    %v491 = vrcp.pop %v490
    %v492 = vmul.f32 1.0, %v491
    %v493 = vtanh.pop %v486
    %v494 = vmul.f32 %v492, %v404
    %496 = vrot.lane.b32.xlu0 %v493, 64
    %v497 = vpop.permute.xlu0 %496
    %v499 = vmul.f32 %v492, %v497
    %501 = vrot.lane.b32.xlu0 %v499, 32
    %v502 = vpop.permute.xlu0 %501
    %v504 = vadd.f32 %v494, %v502
    %v505 = vtanh.pop %v504
    %507 = vrot.lane.b32.xlu0 %v505, 64
    %v508 = vpop.permute.xlu0 %507
    %v510 = vmul.f32 %v492, %v508
    %512 = vrot.lane.b32.xlu0 %v510, 32
    %v513 = vpop.permute.xlu0 %512
    %v514 = vsel %vm212, %v513, 0
    %516 = vmatprep.subr.mxu0 0.0
    %517 = vmatpush1.msra.mxu0 0.0
    %518 = vmatprep.subr.mxu0 0.0
    %519 = vmatpush1.msra.mxu0 0.0
    %520 = vmatprep.subr.mxu0 0.0
    %521 = vmatpush1.msra.mxu0 0.0
    %522 = vmatprep.subr.mxu0 0.0
    %523 = vmatpush1.msra.mxu0 0.0
    %524 = vmatprep.subr.mxu0 0.0
    %525 = vmatpush1.msra.mxu0 0.0
    %526 = vmatprep.subr.mxu0 0.0
    %527 = vmatpush1.msra.mxu0 0.0
    %528 = vmatprep.subr.mxu0 0.0
    %529 = vmatpush1.msra.mxu0 0.0
    %530 = vmatprep.subr.mxu0 0.0
    %531 = vmatpush1.msra.mxu0 0.0
    %532 = vmatprep.subr.mxu0 0.0
    %533 = vmatpush1.msra.mxu0 0.0
    %534 = vmatprep.subr.mxu0 0.0
    %535 = vmatpush1.msra.mxu0 0.0
    %536 = vmatprep.subr.mxu0 0.0
    %537 = vmatpush1.msra.mxu0 0.0
    %538 = vmatprep.subr.mxu0 0.0
    %539 = vmatpush1.msra.mxu0 0.0
    %540 = vmatprep.subr.mxu0 0.0
    %541 = vmatpush1.msra.mxu0 %v211
    %542 = vmatprep.subr.mxu0 0.0
    %543 = vmatpush1.msra.mxu0 %v210
    %544 = vmatprep.subr.mxu0 0.0
    %545 = vmatpush1.msra.mxu0 %v209
    %546 = vmatprep.subr.mxu0 0.0
    %547 = vmatpush1.msra.mxu0 %v208
    %548 = vmatprep.subr.mxu0 0.0
    %549 = vmatpush2.msra.mxu0 0.0
    %550 = vmatprep.subr.mxu0 0.0
    %551 = vmatpush2.msra.mxu0 0.0
    %552 = vmatprep.subr.mxu0 0.0
    %553 = vmatpush2.msra.mxu0 0.0
    %554 = vmatprep.subr.mxu0 0.0
    %555 = vmatpush2.msra.mxu0 0.0
    %556 = vmatprep.subr.mxu0 0.0
    %557 = vmatpush2.msra.mxu0 0.0
    %558 = vmatprep.subr.mxu0 0.0
    %559 = vmatpush2.msra.mxu0 0.0
    %560 = vmatprep.subr.mxu0 0.0
    %561 = vmatpush2.msra.mxu0 0.0
    %562 = vmatprep.subr.mxu0 0.0
    %563 = vmatpush2.msra.mxu0 0.0
    %564 = vmatprep.subr.mxu0 0.0
    %565 = vmatpush2.msra.mxu0 0.0
    %566 = vmatprep.subr.mxu0 0.0
    %567 = vmatpush2.msra.mxu0 0.0
    %568 = vmatprep.subr.mxu0 0.0
    %569 = vmatpush2.msra.mxu0 0.0
    %570 = vmatprep.subr.mxu0 0.0
    %571 = vmatpush2.msra.mxu0 0.0
    %572 = vmatprep.subr.mxu0 0.0
    %573 = vmatpush2.msra.mxu0 0.0
    %574 = vmatprep.subr.mxu0 0.0
    %575 = vmatpush2.msra.mxu0 0.0
    %576 = vmatprep.subr.mxu0 0.0
    %577 = vmatpush2.msra.mxu0 0.0
    %578 = vmatprep.subr.mxu0 0.0
    %579 = vmatpush2.msra.mxu0 0.0
    %580 = vmatprep.mubr.f32.mxu0 0.0
    %581 = vmatmul.mubr.f32.gmra.mxu0 %v514
    %v582 = vpop.f32.mrf.mxu0
    %v583 = vadd.f32 0.0, %v582
    %v584 = vpop.f32.mrf.mxu0
    %585 = vdwg.mxu0
    %v586 = vadd.f32 %v185, %v583
    %v587 = vxor.u32 %v586, 2147483648
    %v588 = vmul.f32 %v587, 1.442695
    %v589 = vpow.pop %v588
    %v590 = vadd.f32 %v589, 1.0
    %v591 = vrcp.pop %v590
    %v592 = vmul.f32 1.0, %v591
    %v593 = vtanh.pop %v586
    %v594 = vmul.f32 %v592, %v504
    %596 = vrot.lane.b32.xlu0 %v593, 64
    %v597 = vpop.permute.xlu0 %596
    %v599 = vmul.f32 %v592, %v597
    %601 = vrot.lane.b32.xlu0 %v599, 32
    %v602 = vpop.permute.xlu0 %601
    %v604 = vadd.f32 %v594, %v602
    %v605 = vtanh.pop %v604
    %607 = vrot.lane.b32.xlu0 %v605, 64
    %v608 = vpop.permute.xlu0 %607
    %v610 = vmul.f32 %v592, %v608
    %612 = vrot.lane.b32.xlu0 %v610, 32
    %v613 = vpop.permute.xlu0 %612
    %v614 = vsel %vm212, %v613, 0
    %616 = vmatprep.subr.mxu0 0.0
    %617 = vmatpush1.msra.mxu0 0.0
    %618 = vmatprep.subr.mxu0 0.0
    %619 = vmatpush1.msra.mxu0 0.0
    %620 = vmatprep.subr.mxu0 0.0
    %621 = vmatpush1.msra.mxu0 0.0
    %622 = vmatprep.subr.mxu0 0.0
    %623 = vmatpush1.msra.mxu0 0.0
    %624 = vmatprep.subr.mxu0 0.0
    %625 = vmatpush1.msra.mxu0 0.0
    %626 = vmatprep.subr.mxu0 0.0
    %627 = vmatpush1.msra.mxu0 0.0
    %628 = vmatprep.subr.mxu0 0.0
    %629 = vmatpush1.msra.mxu0 0.0
    %630 = vmatprep.subr.mxu0 0.0
    %631 = vmatpush1.msra.mxu0 0.0
    %632 = vmatprep.subr.mxu0 0.0
    %633 = vmatpush1.msra.mxu0 0.0
    %634 = vmatprep.subr.mxu0 0.0
    %635 = vmatpush1.msra.mxu0 0.0
    %636 = vmatprep.subr.mxu0 0.0
    %637 = vmatpush1.msra.mxu0 0.0
    %638 = vmatprep.subr.mxu0 0.0
    %639 = vmatpush1.msra.mxu0 0.0
    %640 = vmatprep.subr.mxu0 0.0
    %641 = vmatpush1.msra.mxu0 %v211
    %642 = vmatprep.subr.mxu0 0.0
    %643 = vmatpush1.msra.mxu0 %v210
    %644 = vmatprep.subr.mxu0 0.0
    %645 = vmatpush1.msra.mxu0 %v209
    %646 = vmatprep.subr.mxu0 0.0
    %647 = vmatpush1.msra.mxu0 %v208
    %648 = vmatprep.subr.mxu0 0.0
    %649 = vmatpush2.msra.mxu0 0.0
    %650 = vmatprep.subr.mxu0 0.0
    %651 = vmatpush2.msra.mxu0 0.0
    %652 = vmatprep.subr.mxu0 0.0
    %653 = vmatpush2.msra.mxu0 0.0
    %654 = vmatprep.subr.mxu0 0.0
    %655 = vmatpush2.msra.mxu0 0.0
    %656 = vmatprep.subr.mxu0 0.0
    %657 = vmatpush2.msra.mxu0 0.0
    %658 = vmatprep.subr.mxu0 0.0
    %659 = vmatpush2.msra.mxu0 0.0
    %660 = vmatprep.subr.mxu0 0.0
    %661 = vmatpush2.msra.mxu0 0.0
    %662 = vmatprep.subr.mxu0 0.0
    %663 = vmatpush2.msra.mxu0 0.0
    %664 = vmatprep.subr.mxu0 0.0
    %665 = vmatpush2.msra.mxu0 0.0
    %666 = vmatprep.subr.mxu0 0.0
    %667 = vmatpush2.msra.mxu0 0.0
    %668 = vmatprep.subr.mxu0 0.0
    %669 = vmatpush2.msra.mxu0 0.0
    %670 = vmatprep.subr.mxu0 0.0
    %671 = vmatpush2.msra.mxu0 0.0
    %672 = vmatprep.subr.mxu0 0.0
    %673 = vmatpush2.msra.mxu0 0.0
    %674 = vmatprep.subr.mxu0 0.0
    %675 = vmatpush2.msra.mxu0 0.0
    %676 = vmatprep.subr.mxu0 0.0
    %677 = vmatpush2.msra.mxu0 0.0
    %678 = vmatprep.subr.mxu0 0.0
    %679 = vmatpush2.msra.mxu0 0.0
    %680 = vmatprep.mubr.f32.mxu0 0.0
    %681 = vmatmul.mubr.f32.gmra.mxu0 %v614
    %v682 = vpop.f32.mrf.mxu0
    %v683 = vadd.f32 0.0, %v682
    %v684 = vpop.f32.mrf.mxu0
    %685 = vdwg.mxu0
    %v686 = vadd.f32 %v190, %v683
    %v687 = vxor.u32 %v686, 2147483648
    %v688 = vmul.f32 %v687, 1.442695
    %v689 = vpow.pop %v688
    %v690 = vadd.f32 %v689, 1.0
    %v691 = vrcp.pop %v690
    %v692 = vmul.f32 1.0, %v691
    %v693 = vtanh.pop %v686
    %v694 = vmul.f32 %v692, %v604
    %696 = vrot.lane.b32.xlu0 %v693, 64
    %v697 = vpop.permute.xlu0 %696
    %v699 = vmul.f32 %v692, %v697
    %701 = vrot.lane.b32.xlu0 %v699, 32
    %v702 = vpop.permute.xlu0 %701
    %v704 = vadd.f32 %v694, %v702
    %v705 = vtanh.pop %v704
    %707 = vrot.lane.b32.xlu0 %v705, 64
    %v708 = vpop.permute.xlu0 %707
    %v710 = vmul.f32 %v692, %v708
    %712 = vrot.lane.b32.xlu0 %v710, 32
    %v713 = vpop.permute.xlu0 %712
    %v714 = vsel %vm212, %v713, 0
    %716 = vmatprep.subr.mxu0 0.0
    %717 = vmatpush1.msra.mxu0 0.0
    %718 = vmatprep.subr.mxu0 0.0
    %719 = vmatpush1.msra.mxu0 0.0
    %720 = vmatprep.subr.mxu0 0.0
    %721 = vmatpush1.msra.mxu0 0.0
    %722 = vmatprep.subr.mxu0 0.0
    %723 = vmatpush1.msra.mxu0 0.0
    %724 = vmatprep.subr.mxu0 0.0
    %725 = vmatpush1.msra.mxu0 0.0
    %726 = vmatprep.subr.mxu0 0.0
    %727 = vmatpush1.msra.mxu0 0.0
    %728 = vmatprep.subr.mxu0 0.0
    %729 = vmatpush1.msra.mxu0 0.0
    %730 = vmatprep.subr.mxu0 0.0
    %731 = vmatpush1.msra.mxu0 0.0
    %732 = vmatprep.subr.mxu0 0.0
    %733 = vmatpush1.msra.mxu0 0.0
    %734 = vmatprep.subr.mxu0 0.0
    %735 = vmatpush1.msra.mxu0 0.0
    %736 = vmatprep.subr.mxu0 0.0
    %737 = vmatpush1.msra.mxu0 0.0
    %738 = vmatprep.subr.mxu0 0.0
    %739 = vmatpush1.msra.mxu0 0.0
    %740 = vmatprep.subr.mxu0 0.0
    %741 = vmatpush1.msra.mxu0 %v211
    %742 = vmatprep.subr.mxu0 0.0
    %743 = vmatpush1.msra.mxu0 %v210
    %744 = vmatprep.subr.mxu0 0.0
    %745 = vmatpush1.msra.mxu0 %v209
    %746 = vmatprep.subr.mxu0 0.0
    %747 = vmatpush1.msra.mxu0 %v208
    %748 = vmatprep.subr.mxu0 0.0
    %749 = vmatpush2.msra.mxu0 0.0
    %750 = vmatprep.subr.mxu0 0.0
    %751 = vmatpush2.msra.mxu0 0.0
    %752 = vmatprep.subr.mxu0 0.0
    %753 = vmatpush2.msra.mxu0 0.0
    %754 = vmatprep.subr.mxu0 0.0
    %755 = vmatpush2.msra.mxu0 0.0
    %756 = vmatprep.subr.mxu0 0.0
    %757 = vmatpush2.msra.mxu0 0.0
    %758 = vmatprep.subr.mxu0 0.0
    %759 = vmatpush2.msra.mxu0 0.0
    %760 = vmatprep.subr.mxu0 0.0
    %761 = vmatpush2.msra.mxu0 0.0
    %762 = vmatprep.subr.mxu0 0.0
    %763 = vmatpush2.msra.mxu0 0.0
    %764 = vmatprep.subr.mxu0 0.0
    %765 = vmatpush2.msra.mxu0 0.0
    %766 = vmatprep.subr.mxu0 0.0
    %767 = vmatpush2.msra.mxu0 0.0
    %768 = vmatprep.subr.mxu0 0.0
    %769 = vmatpush2.msra.mxu0 0.0
    %770 = vmatprep.subr.mxu0 0.0
    %771 = vmatpush2.msra.mxu0 0.0
    %772 = vmatprep.subr.mxu0 0.0
    %773 = vmatpush2.msra.mxu0 0.0
    %774 = vmatprep.subr.mxu0 0.0
    %775 = vmatpush2.msra.mxu0 0.0
    %776 = vmatprep.subr.mxu0 0.0
    %777 = vmatpush2.msra.mxu0 0.0
    %778 = vmatprep.subr.mxu0 0.0
    %779 = vmatpush2.msra.mxu0 0.0
    %780 = vmatprep.mubr.f32.mxu0 0.0
    %781 = vmatmul.mubr.f32.gmra.mxu0 %v714
    %v782 = vpop.f32.mrf.mxu0
    %v783 = vadd.f32 0.0, %v782
    %v784 = vpop.f32.mrf.mxu0
    %785 = vdwg.mxu0
    %v786 = vadd.f32 %v195, %v783
    %v787 = vxor.u32 %v786, 2147483648
    %v788 = vmul.f32 %v787, 1.442695
    %v789 = vpow.pop %v788
    %v790 = vadd.f32 %v789, 1.0
    %v791 = vrcp.pop %v790
    %v792 = vmul.f32 1.0, %v791
    %v793 = vtanh.pop %v786
    %v794 = vmul.f32 %v792, %v704
    %796 = vrot.lane.b32.xlu0 %v793, 64
    %v797 = vpop.permute.xlu0 %796
    %v799 = vmul.f32 %v792, %v797
    %801 = vrot.lane.b32.xlu0 %v799, 32
    %v802 = vpop.permute.xlu0 %801
    %v804 = vadd.f32 %v794, %v802
    %v805 = vtanh.pop %v804
    %807 = vrot.lane.b32.xlu0 %v805, 64
    %v808 = vpop.permute.xlu0 %807
    %v810 = vmul.f32 %v792, %v808
    %812 = vrot.lane.b32.xlu0 %v810, 32
    %v813 = vpop.permute.xlu0 %812
    %v814 = vsel %vm212, %v813, 0
    %816 = vmatprep.subr.mxu0 0.0
    %817 = vmatpush1.msra.mxu0 0.0
    %818 = vmatprep.subr.mxu0 0.0
    %819 = vmatpush1.msra.mxu0 0.0
    %820 = vmatprep.subr.mxu0 0.0
    %821 = vmatpush1.msra.mxu0 0.0
    %822 = vmatprep.subr.mxu0 0.0
    %823 = vmatpush1.msra.mxu0 0.0
    %824 = vmatprep.subr.mxu0 0.0
    %825 = vmatpush1.msra.mxu0 0.0
    %826 = vmatprep.subr.mxu0 0.0
    %827 = vmatpush1.msra.mxu0 0.0
    %828 = vmatprep.subr.mxu0 0.0
    %829 = vmatpush1.msra.mxu0 0.0
    %830 = vmatprep.subr.mxu0 0.0
    %831 = vmatpush1.msra.mxu0 0.0
    %832 = vmatprep.subr.mxu0 0.0
    %833 = vmatpush1.msra.mxu0 0.0
    %834 = vmatprep.subr.mxu0 0.0
    %835 = vmatpush1.msra.mxu0 0.0
    %836 = vmatprep.subr.mxu0 0.0
    %837 = vmatpush1.msra.mxu0 0.0
    %838 = vmatprep.subr.mxu0 0.0
    %839 = vmatpush1.msra.mxu0 0.0
    %840 = vmatprep.subr.mxu0 0.0
    %841 = vmatpush1.msra.mxu0 %v211
    %842 = vmatprep.subr.mxu0 0.0
    %843 = vmatpush1.msra.mxu0 %v210
    %844 = vmatprep.subr.mxu0 0.0
    %845 = vmatpush1.msra.mxu0 %v209
    %846 = vmatprep.subr.mxu0 0.0
    %847 = vmatpush1.msra.mxu0 %v208
    %848 = vmatprep.subr.mxu0 0.0
    %849 = vmatpush2.msra.mxu0 0.0
    %850 = vmatprep.subr.mxu0 0.0
    %851 = vmatpush2.msra.mxu0 0.0
    %852 = vmatprep.subr.mxu0 0.0
    %853 = vmatpush2.msra.mxu0 0.0
    %854 = vmatprep.subr.mxu0 0.0
    %855 = vmatpush2.msra.mxu0 0.0
    %856 = vmatprep.subr.mxu0 0.0
    %857 = vmatpush2.msra.mxu0 0.0
    %858 = vmatprep.subr.mxu0 0.0
    %859 = vmatpush2.msra.mxu0 0.0
    %860 = vmatprep.subr.mxu0 0.0
    %861 = vmatpush2.msra.mxu0 0.0
    %862 = vmatprep.subr.mxu0 0.0
    %863 = vmatpush2.msra.mxu0 0.0
    %864 = vmatprep.subr.mxu0 0.0
    %865 = vmatpush2.msra.mxu0 0.0
    %866 = vmatprep.subr.mxu0 0.0
    %867 = vmatpush2.msra.mxu0 0.0
    %868 = vmatprep.subr.mxu0 0.0
    %869 = vmatpush2.msra.mxu0 0.0
    %870 = vmatprep.subr.mxu0 0.0
    %871 = vmatpush2.msra.mxu0 0.0
    %872 = vmatprep.subr.mxu0 0.0
    %873 = vmatpush2.msra.mxu0 0.0
    %874 = vmatprep.subr.mxu0 0.0
    %875 = vmatpush2.msra.mxu0 0.0
    %876 = vmatprep.subr.mxu0 0.0
    %877 = vmatpush2.msra.mxu0 0.0
    %878 = vmatprep.subr.mxu0 0.0
    %879 = vmatpush2.msra.mxu0 0.0
    %880 = vmatprep.mubr.f32.mxu0 0.0
    %881 = vmatmul.mubr.f32.gmra.mxu0 %v814
    %v882 = vpop.f32.mrf.mxu0
    %v883 = vadd.f32 0.0, %v882
    %v884 = vpop.f32.mrf.mxu0
    %885 = vdwg.mxu0
    %v886 = vadd.f32 %v200, %v883
    %v887 = vxor.u32 %v886, 2147483648
    %v888 = vmul.f32 %v887, 1.442695
    %v889 = vpow.pop %v888
    %v890 = vadd.f32 %v889, 1.0
    %v891 = vrcp.pop %v890
    %v892 = vmul.f32 1.0, %v891
    %v893 = vtanh.pop %v886
    %v894 = vmul.f32 %v892, %v804
    %896 = vrot.lane.b32.xlu0 %v893, 64
    %v897 = vpop.permute.xlu0 %896
    %v899 = vmul.f32 %v892, %v897
    %901 = vrot.lane.b32.xlu0 %v899, 32
    %v902 = vpop.permute.xlu0 %901
    %v904 = vadd.f32 %v894, %v902
    %v905 = vtanh.pop %v904
    %907 = vrot.lane.b32.xlu0 %v905, 64
    %v908 = vpop.permute.xlu0 %907
    %v910 = vmul.f32 %v892, %v908
    %912 = vrot.lane.b32.xlu0 %v910, 32
    %v913 = vpop.permute.xlu0 %912
    %v914 = vsel %vm212, %v913, 0
    %916 = vmatprep.subr.mxu0 0.0
    %917 = vmatpush1.msra.mxu0 0.0
    %918 = vmatprep.subr.mxu0 0.0
    %919 = vmatpush1.msra.mxu0 0.0
    %920 = vmatprep.subr.mxu0 0.0
    %921 = vmatpush1.msra.mxu0 0.0
    %922 = vmatprep.subr.mxu0 0.0
    %923 = vmatpush1.msra.mxu0 0.0
    %924 = vmatprep.subr.mxu0 0.0
    %925 = vmatpush1.msra.mxu0 0.0
    %926 = vmatprep.subr.mxu0 0.0
    %927 = vmatpush1.msra.mxu0 0.0
    %928 = vmatprep.subr.mxu0 0.0
    %929 = vmatpush1.msra.mxu0 0.0
    %930 = vmatprep.subr.mxu0 0.0
    %931 = vmatpush1.msra.mxu0 0.0
    %932 = vmatprep.subr.mxu0 0.0
    %933 = vmatpush1.msra.mxu0 0.0
    %934 = vmatprep.subr.mxu0 0.0
    %935 = vmatpush1.msra.mxu0 0.0
    %936 = vmatprep.subr.mxu0 0.0
    %937 = vmatpush1.msra.mxu0 0.0
    %938 = vmatprep.subr.mxu0 0.0
    %939 = vmatpush1.msra.mxu0 0.0
    %940 = vmatprep.subr.mxu0 0.0
    %941 = vmatpush1.msra.mxu0 %v211
    %942 = vmatprep.subr.mxu0 0.0
    %943 = vmatpush1.msra.mxu0 %v210
    %944 = vmatprep.subr.mxu0 0.0
    %945 = vmatpush1.msra.mxu0 %v209
    %946 = vmatprep.subr.mxu0 0.0
    %947 = vmatpush1.msra.mxu0 %v208
    %948 = vmatprep.subr.mxu0 0.0
    %949 = vmatpush2.msra.mxu0 0.0
    %950 = vmatprep.subr.mxu0 0.0
    %951 = vmatpush2.msra.mxu0 0.0
    %952 = vmatprep.subr.mxu0 0.0
    %953 = vmatpush2.msra.mxu0 0.0
    %954 = vmatprep.subr.mxu0 0.0
    %955 = vmatpush2.msra.mxu0 0.0
    %956 = vmatprep.subr.mxu0 0.0
    %957 = vmatpush2.msra.mxu0 0.0
    %958 = vmatprep.subr.mxu0 0.0
    %959 = vmatpush2.msra.mxu0 0.0
    %960 = vmatprep.subr.mxu0 0.0
    %961 = vmatpush2.msra.mxu0 0.0
    %962 = vmatprep.subr.mxu0 0.0
    %963 = vmatpush2.msra.mxu0 0.0
    %964 = vmatprep.subr.mxu0 0.0
    %965 = vmatpush2.msra.mxu0 0.0
    %966 = vmatprep.subr.mxu0 0.0
    %967 = vmatpush2.msra.mxu0 0.0
    %968 = vmatprep.subr.mxu0 0.0
    %969 = vmatpush2.msra.mxu0 0.0
    %970 = vmatprep.subr.mxu0 0.0
    %971 = vmatpush2.msra.mxu0 0.0
    %972 = vmatprep.subr.mxu0 0.0
    %973 = vmatpush2.msra.mxu0 0.0
    %974 = vmatprep.subr.mxu0 0.0
    %975 = vmatpush2.msra.mxu0 0.0
    %976 = vmatprep.subr.mxu0 0.0
    %977 = vmatpush2.msra.mxu0 0.0
    %978 = vmatprep.subr.mxu0 0.0
    %979 = vmatpush2.msra.mxu0 0.0
    %980 = vmatprep.mubr.f32.mxu0 0.0
    %981 = vmatmul.mubr.f32.gmra.mxu0 %v914
    %v982 = vpop.f32.mrf.mxu0
    %v983 = vadd.f32 0.0, %v982
    %v984 = vpop.f32.mrf.mxu0
    %985 = vdwg.mxu0
    %v986 = vadd.f32 %v205, %v983
    %v987 = vxor.u32 %v986, 2147483648
    %v988 = vmul.f32 %v987, 1.442695
    %v989 = vpow.pop %v988
    %v990 = vadd.f32 %v989, 1.0
    %v991 = vrcp.pop %v990
    %v992 = vmul.f32 1.0, %v991
    %v993 = vtanh.pop %v986
    %v994 = vmul.f32 %v992, %v904
    %996 = vrot.lane.b32.xlu0 %v993, 64
    %v997 = vpop.permute.xlu0 %996
    %v999 = vmul.f32 %v992, %v997
    %1001 = vrot.lane.b32.xlu0 %v999, 32
    %v1002 = vpop.permute.xlu0 %1001
    %v1004 = vadd.f32 %v994, %v1002
    %v1005 = vtanh.pop %v1004
    %1007 = vrot.lane.b32.xlu0 %v1005, 64
    %v1008 = vpop.permute.xlu0 %1007
    %v1010 = vmul.f32 %v992, %v1008
    %v1011 = vld [vmem:[%s4] sm:$0xff]
    %v1012 = vld [vmem:[%s4 + $0x8] sm:$0xff]
    %v1013 = vld [vmem:[%s4 + $0x10] sm:$0xff]
    %v1014 = vld [vmem:[%s4 + $0x18] sm:$0xff]
    %v1015 = vld [vmem:[%s6] sm:$0x1]
    %v1017 = vlaneseq
    %v1018 = vshrl.u32 %v1017, 7
    %v1019 = vsub.s32 0, %v1018
    %v1020 = vrot.slane %v1015, %v1019
    %1023 = vrot.lane.b32.xlu0 %v1010, 32
    %v1024 = vpop.permute.xlu0 %1023
    %v1025 = vsel %vm212, %v1024, 0
    %1027 = vmatprep.subr.mxu0 0.0
    %1028 = vmatpush1.msra.mxu0 0.0
    %1029 = vmatprep.subr.mxu0 0.0
    %1030 = vmatpush1.msra.mxu0 0.0
    %1031 = vmatprep.subr.mxu0 0.0
    %1032 = vmatpush1.msra.mxu0 0.0
    %1033 = vmatprep.subr.mxu0 0.0
    %1034 = vmatpush1.msra.mxu0 0.0
    %1035 = vmatprep.subr.mxu0 0.0
    %1036 = vmatpush1.msra.mxu0 0.0
    %1037 = vmatprep.subr.mxu0 0.0
    %1038 = vmatpush1.msra.mxu0 0.0
    %1039 = vmatprep.subr.mxu0 0.0
    %1040 = vmatpush1.msra.mxu0 0.0
    %1041 = vmatprep.subr.mxu0 0.0
    %1042 = vmatpush1.msra.mxu0 0.0
    %1043 = vmatprep.subr.mxu0 0.0
    %1044 = vmatpush1.msra.mxu0 0.0
    %1045 = vmatprep.subr.mxu0 0.0
    %1046 = vmatpush1.msra.mxu0 0.0
    %1047 = vmatprep.subr.mxu0 0.0
    %1048 = vmatpush1.msra.mxu0 0.0
    %1049 = vmatprep.subr.mxu0 0.0
    %1050 = vmatpush1.msra.mxu0 0.0
    %1051 = vmatprep.subr.mxu0 0.0
    %1052 = vmatpush1.msra.mxu0 %v1014
    %1053 = vmatprep.subr.mxu0 0.0
    %1054 = vmatpush1.msra.mxu0 %v1013
    %1055 = vmatprep.subr.mxu0 0.0
    %1056 = vmatpush1.msra.mxu0 %v1012
    %1057 = vmatprep.subr.mxu0 0.0
    %1058 = vmatpush1.msra.mxu0 %v1011
    %1059 = vmatprep.subr.mxu0 0.0
    %1060 = vmatpush2.msra.mxu0 0.0
    %1061 = vmatprep.subr.mxu0 0.0
    %1062 = vmatpush2.msra.mxu0 0.0
    %1063 = vmatprep.subr.mxu0 0.0
    %1064 = vmatpush2.msra.mxu0 0.0
    %1065 = vmatprep.subr.mxu0 0.0
    %1066 = vmatpush2.msra.mxu0 0.0
    %1067 = vmatprep.subr.mxu0 0.0
    %1068 = vmatpush2.msra.mxu0 0.0
    %1069 = vmatprep.subr.mxu0 0.0
    %1070 = vmatpush2.msra.mxu0 0.0
    %1071 = vmatprep.subr.mxu0 0.0
    %1072 = vmatpush2.msra.mxu0 0.0
    %1073 = vmatprep.subr.mxu0 0.0
    %1074 = vmatpush2.msra.mxu0 0.0
    %1075 = vmatprep.subr.mxu0 0.0
    %1076 = vmatpush2.msra.mxu0 0.0
    %1077 = vmatprep.subr.mxu0 0.0
    %1078 = vmatpush2.msra.mxu0 0.0
    %1079 = vmatprep.subr.mxu0 0.0
    %1080 = vmatpush2.msra.mxu0 0.0
    %1081 = vmatprep.subr.mxu0 0.0
    %1082 = vmatpush2.msra.mxu0 0.0
    %1083 = vmatprep.subr.mxu0 0.0
    %1084 = vmatpush2.msra.mxu0 0.0
    %1085 = vmatprep.subr.mxu0 0.0
    %1086 = vmatpush2.msra.mxu0 0.0
    %1087 = vmatprep.subr.mxu0 0.0
    %1088 = vmatpush2.msra.mxu0 0.0
    %1089 = vmatprep.subr.mxu0 0.0
    %1090 = vmatpush2.msra.mxu0 0.0
    %1091 = vmatprep.mubr.f32.mxu0 0.0
    %1092 = vmatmul.mubr.f32.gmra.mxu0 %v314
    %v1093 = vpop.f32.mrf.mxu0
    %v1094 = vadd.f32 %v1020, %v1093
    %v1095 = vpop.f32.mrf.mxu0
    %1096 = vmatprep.mubr.f32.mxu0 0.0
    %1097 = vmatmul.mubr.f32.gmra.mxu0 %v414
    %v1098 = vpop.f32.mrf.mxu0
    %v1099 = vadd.f32 %v1020, %v1098
    %v1100 = vpop.f32.mrf.mxu0
    %1101 = vmatprep.mubr.f32.mxu0 0.0
    %1102 = vmatmul.mubr.f32.gmra.mxu0 %v514
    %v1103 = vpop.f32.mrf.mxu0
    %v1104 = vadd.f32 %v1020, %v1103
    %v1105 = vpop.f32.mrf.mxu0
    %1106 = vmatprep.mubr.f32.mxu0 0.0
    %1107 = vmatmul.mubr.f32.gmra.mxu0 %v614
    %v1108 = vpop.f32.mrf.mxu0
    %v1109 = vadd.f32 %v1020, %v1108
    %v1110 = vpop.f32.mrf.mxu0
    %1111 = vmatprep.mubr.f32.mxu0 0.0
    %1112 = vmatmul.mubr.f32.gmra.mxu0 %v714
    %v1113 = vpop.f32.mrf.mxu0
    %v1114 = vadd.f32 %v1020, %v1113
    %v1115 = vpop.f32.mrf.mxu0
    %1116 = vmatprep.mubr.f32.mxu0 0.0
    %1117 = vmatmul.mubr.f32.gmra.mxu0 %v814
    %v1118 = vpop.f32.mrf.mxu0
    %v1119 = vadd.f32 %v1020, %v1118
    %v1120 = vpop.f32.mrf.mxu0
    %1121 = vmatprep.mubr.f32.mxu0 0.0
    %1122 = vmatmul.mubr.f32.gmra.mxu0 %v914
    %v1123 = vpop.f32.mrf.mxu0
    %v1124 = vadd.f32 %v1020, %v1123
    %v1125 = vpop.f32.mrf.mxu0
    %1126 = vmatprep.mubr.f32.mxu0 0.0
    %1127 = vmatmul.mubr.f32.gmra.mxu0 %v1025
    %v1128 = vpop.f32.mrf.mxu0
    %v1129 = vadd.f32 %v1020, %v1128
    %v1130 = vpop.f32.mrf.mxu0
    %1131 = vdwg.mxu0
    %v1132 = vld [vmem:[#allocation2] sm:$0xff]
    %v1133 = vld [vmem:[#allocation2 + $0x8] sm:$0xff]
    %v1134 = vld [vmem:[#allocation2 + $0x10] sm:$0xff]
    %v1135 = vld [vmem:[#allocation2 + $0x18] sm:$0xff]
    %1136 = vmatprep.subr.mxu0 0.0
    %1137 = vmatpush1.msra.mxu0 0.0
    %1138 = vmatprep.subr.mxu0 0.0
    %1139 = vmatpush1.msra.mxu0 0.0
    %1140 = vmatprep.subr.mxu0 0.0
    %1141 = vmatpush1.msra.mxu0 0.0
    %1142 = vmatprep.subr.mxu0 0.0
    %1143 = vmatpush1.msra.mxu0 0.0
    %1144 = vmatprep.subr.mxu0 0.0
    %1145 = vmatpush1.msra.mxu0 0.0
    %1146 = vmatprep.subr.mxu0 0.0
    %1147 = vmatpush1.msra.mxu0 0.0
    %1148 = vmatprep.subr.mxu0 0.0
    %1149 = vmatpush1.msra.mxu0 0.0
    %1150 = vmatprep.subr.mxu0 0.0
    %1151 = vmatpush1.msra.mxu0 0.0
    %1152 = vmatprep.subr.mxu0 0.0
    %1153 = vmatpush1.msra.mxu0 0.0
    %1154 = vmatprep.subr.mxu0 0.0
    %1155 = vmatpush1.msra.mxu0 0.0
    %1156 = vmatprep.subr.mxu0 0.0
    %1157 = vmatpush1.msra.mxu0 0.0
    %1158 = vmatprep.subr.mxu0 0.0
    %1159 = vmatpush1.msra.mxu0 0.0
    %1160 = vmatprep.subr.mxu0 0.0
    %1161 = vmatpush1.msra.mxu0 %v1135
    %1162 = vmatprep.subr.mxu0 0.0
    %1163 = vmatpush1.msra.mxu0 %v1134
    %1164 = vmatprep.subr.mxu0 0.0
    %1165 = vmatpush1.msra.mxu0 %v1133
    %1166 = vmatprep.subr.mxu0 0.0
    %1167 = vmatpush1.msra.mxu0 %v1132
    %1168 = vmatprep.subr.mxu0 0.0
    %1169 = vmatpush2.msra.mxu0 0.0
    %1170 = vmatprep.subr.mxu0 0.0
    %1171 = vmatpush2.msra.mxu0 0.0
    %1172 = vmatprep.subr.mxu0 0.0
    %1173 = vmatpush2.msra.mxu0 0.0
    %1174 = vmatprep.subr.mxu0 0.0
    %1175 = vmatpush2.msra.mxu0 0.0
    %1176 = vmatprep.subr.mxu0 0.0
    %1177 = vmatpush2.msra.mxu0 0.0
    %1178 = vmatprep.subr.mxu0 0.0
    %1179 = vmatpush2.msra.mxu0 0.0
    %1180 = vmatprep.subr.mxu0 0.0
    %1181 = vmatpush2.msra.mxu0 0.0
    %1182 = vmatprep.subr.mxu0 0.0
    %1183 = vmatpush2.msra.mxu0 0.0
    %1184 = vmatprep.subr.mxu0 0.0
    %1185 = vmatpush2.msra.mxu0 0.0
    %1186 = vmatprep.subr.mxu0 0.0
    %1187 = vmatpush2.msra.mxu0 0.0
    %1188 = vmatprep.subr.mxu0 0.0
    %1189 = vmatpush2.msra.mxu0 0.0
    %1190 = vmatprep.subr.mxu0 0.0
    %1191 = vmatpush2.msra.mxu0 0.0
    %1192 = vmatprep.subr.mxu0 0.0
    %1193 = vmatpush2.msra.mxu0 0.0
    %1194 = vmatprep.subr.mxu0 0.0
    %1195 = vmatpush2.msra.mxu0 0.0
    %1196 = vmatprep.subr.mxu0 0.0
    %1197 = vmatpush2.msra.mxu0 0.0
    %1198 = vmatprep.subr.mxu0 0.0
    %1199 = vmatpush2.msra.mxu0 0.0
    %1200 = vmatprep.mubr.f32.mxu0 0.0
    %1201 = vmatmul.mubr.f32.gmra.mxu0 %v214
    %v1202 = vpop.f32.mrf.mxu0
    %v1203 = vadd.f32 0.0, %v1202
    %v1204 = vpop.f32.mrf.mxu0
    %1205 = vdwg.mxu0
    %v1206 = vadd.f32 %v1094, %v1203
    %v1207 = vxor.u32 %v1206, 2147483648
    %v1208 = vmul.f32 %v1207, 1.442695
    %v1209 = vpow.pop %v1208
    %v1210 = vadd.f32 %v1209, 1.0
    %v1211 = vrcp.pop %v1210
    %v1212 = vmul.f32 1.0, %v1211
    %v1213 = vtanh.pop %v1206
    %v1214 = vmul.f32 %v1212, 0.0
    %1216 = vrot.lane.b32.xlu0 %v1213, 64
    %v1217 = vpop.permute.xlu0 %1216
    %v1219 = vmul.f32 %v1212, %v1217
    %1221 = vrot.lane.b32.xlu0 %v1219, 32
    %v1222 = vpop.permute.xlu0 %1221
    %v1224 = vadd.f32 %v1214, %v1222
    %v1225 = vtanh.pop %v1224
    %1227 = vrot.lane.b32.xlu0 %v1225, 64
    %v1228 = vpop.permute.xlu0 %1227
    %v1230 = vmul.f32 %v1212, %v1228
    %1232 = vrot.lane.b32.xlu0 %v1230, 32
    %v1233 = vpop.permute.xlu0 %1232
    %v1234 = vsel %vm212, %v1233, 0
    %1236 = vmatprep.subr.mxu0 0.0
    %1237 = vmatpush1.msra.mxu0 0.0
    %1238 = vmatprep.subr.mxu0 0.0
    %1239 = vmatpush1.msra.mxu0 0.0
    %1240 = vmatprep.subr.mxu0 0.0
    %1241 = vmatpush1.msra.mxu0 0.0
    %1242 = vmatprep.subr.mxu0 0.0
    %1243 = vmatpush1.msra.mxu0 0.0
    %1244 = vmatprep.subr.mxu0 0.0
    %1245 = vmatpush1.msra.mxu0 0.0
    %1246 = vmatprep.subr.mxu0 0.0
    %1247 = vmatpush1.msra.mxu0 0.0
    %1248 = vmatprep.subr.mxu0 0.0
    %1249 = vmatpush1.msra.mxu0 0.0
    %1250 = vmatprep.subr.mxu0 0.0
    %1251 = vmatpush1.msra.mxu0 0.0
    %1252 = vmatprep.subr.mxu0 0.0
    %1253 = vmatpush1.msra.mxu0 0.0
    %1254 = vmatprep.subr.mxu0 0.0
    %1255 = vmatpush1.msra.mxu0 0.0
    %1256 = vmatprep.subr.mxu0 0.0
    %1257 = vmatpush1.msra.mxu0 0.0
    %1258 = vmatprep.subr.mxu0 0.0
    %1259 = vmatpush1.msra.mxu0 0.0
    %1260 = vmatprep.subr.mxu0 0.0
    %1261 = vmatpush1.msra.mxu0 %v1135
    %1262 = vmatprep.subr.mxu0 0.0
    %1263 = vmatpush1.msra.mxu0 %v1134
    %1264 = vmatprep.subr.mxu0 0.0
    %1265 = vmatpush1.msra.mxu0 %v1133
    %1266 = vmatprep.subr.mxu0 0.0
    %1267 = vmatpush1.msra.mxu0 %v1132
    %1268 = vmatprep.subr.mxu0 0.0
    %1269 = vmatpush2.msra.mxu0 0.0
    %1270 = vmatprep.subr.mxu0 0.0
    %1271 = vmatpush2.msra.mxu0 0.0
    %1272 = vmatprep.subr.mxu0 0.0
    %1273 = vmatpush2.msra.mxu0 0.0
    %1274 = vmatprep.subr.mxu0 0.0
    %1275 = vmatpush2.msra.mxu0 0.0
    %1276 = vmatprep.subr.mxu0 0.0
    %1277 = vmatpush2.msra.mxu0 0.0
    %1278 = vmatprep.subr.mxu0 0.0
    %1279 = vmatpush2.msra.mxu0 0.0
    %1280 = vmatprep.subr.mxu0 0.0
    %1281 = vmatpush2.msra.mxu0 0.0
    %1282 = vmatprep.subr.mxu0 0.0
    %1283 = vmatpush2.msra.mxu0 0.0
    %1284 = vmatprep.subr.mxu0 0.0
    %1285 = vmatpush2.msra.mxu0 0.0
    %1286 = vmatprep.subr.mxu0 0.0
    %1287 = vmatpush2.msra.mxu0 0.0
    %1288 = vmatprep.subr.mxu0 0.0
    %1289 = vmatpush2.msra.mxu0 0.0
    %1290 = vmatprep.subr.mxu0 0.0
    %1291 = vmatpush2.msra.mxu0 0.0
    %1292 = vmatprep.subr.mxu0 0.0
    %1293 = vmatpush2.msra.mxu0 0.0
    %1294 = vmatprep.subr.mxu0 0.0
    %1295 = vmatpush2.msra.mxu0 0.0
    %1296 = vmatprep.subr.mxu0 0.0
    %1297 = vmatpush2.msra.mxu0 0.0
    %1298 = vmatprep.subr.mxu0 0.0
    %1299 = vmatpush2.msra.mxu0 0.0
    %1300 = vmatprep.mubr.f32.mxu0 0.0
    %1301 = vmatmul.mubr.f32.gmra.mxu0 %v1234
    %v1302 = vpop.f32.mrf.mxu0
    %v1303 = vadd.f32 0.0, %v1302
    %v1304 = vpop.f32.mrf.mxu0
    %1305 = vdwg.mxu0
    %v1306 = vadd.f32 %v1099, %v1303
    %v1307 = vxor.u32 %v1306, 2147483648
    %v1308 = vmul.f32 %v1307, 1.442695
    %v1309 = vpow.pop %v1308
    %v1310 = vadd.f32 %v1309, 1.0
    %v1311 = vrcp.pop %v1310
    %v1312 = vmul.f32 1.0, %v1311
    %v1313 = vtanh.pop %v1306
    %v1314 = vmul.f32 %v1312, %v1224
    %1316 = vrot.lane.b32.xlu0 %v1313, 64
    %v1317 = vpop.permute.xlu0 %1316
    %v1319 = vmul.f32 %v1312, %v1317
    %1321 = vrot.lane.b32.xlu0 %v1319, 32
    %v1322 = vpop.permute.xlu0 %1321
    %v1324 = vadd.f32 %v1314, %v1322
    %v1325 = vtanh.pop %v1324
    %1327 = vrot.lane.b32.xlu0 %v1325, 64
    %v1328 = vpop.permute.xlu0 %1327
    %v1330 = vmul.f32 %v1312, %v1328
    %1332 = vrot.lane.b32.xlu0 %v1330, 32
    %v1333 = vpop.permute.xlu0 %1332
    %v1334 = vsel %vm212, %v1333, 0
    %1336 = vmatprep.subr.mxu0 0.0
    %1337 = vmatpush1.msra.mxu0 0.0
    %1338 = vmatprep.subr.mxu0 0.0
    %1339 = vmatpush1.msra.mxu0 0.0
    %1340 = vmatprep.subr.mxu0 0.0
    %1341 = vmatpush1.msra.mxu0 0.0
    %1342 = vmatprep.subr.mxu0 0.0
    %1343 = vmatpush1.msra.mxu0 0.0
    %1344 = vmatprep.subr.mxu0 0.0
    %1345 = vmatpush1.msra.mxu0 0.0
    %1346 = vmatprep.subr.mxu0 0.0
    %1347 = vmatpush1.msra.mxu0 0.0
    %1348 = vmatprep.subr.mxu0 0.0
    %1349 = vmatpush1.msra.mxu0 0.0
    %1350 = vmatprep.subr.mxu0 0.0
    %1351 = vmatpush1.msra.mxu0 0.0
    %1352 = vmatprep.subr.mxu0 0.0
    %1353 = vmatpush1.msra.mxu0 0.0
    %1354 = vmatprep.subr.mxu0 0.0
    %1355 = vmatpush1.msra.mxu0 0.0
    %1356 = vmatprep.subr.mxu0 0.0
    %1357 = vmatpush1.msra.mxu0 0.0
    %1358 = vmatprep.subr.mxu0 0.0
    %1359 = vmatpush1.msra.mxu0 0.0
    %1360 = vmatprep.subr.mxu0 0.0
    %1361 = vmatpush1.msra.mxu0 %v1135
    %1362 = vmatprep.subr.mxu0 0.0
    %1363 = vmatpush1.msra.mxu0 %v1134
    %1364 = vmatprep.subr.mxu0 0.0
    %1365 = vmatpush1.msra.mxu0 %v1133
    %1366 = vmatprep.subr.mxu0 0.0
    %1367 = vmatpush1.msra.mxu0 %v1132
    %1368 = vmatprep.subr.mxu0 0.0
    %1369 = vmatpush2.msra.mxu0 0.0
    %1370 = vmatprep.subr.mxu0 0.0
    %1371 = vmatpush2.msra.mxu0 0.0
    %1372 = vmatprep.subr.mxu0 0.0
    %1373 = vmatpush2.msra.mxu0 0.0
    %1374 = vmatprep.subr.mxu0 0.0
    %1375 = vmatpush2.msra.mxu0 0.0
    %1376 = vmatprep.subr.mxu0 0.0
    %1377 = vmatpush2.msra.mxu0 0.0
    %1378 = vmatprep.subr.mxu0 0.0
    %1379 = vmatpush2.msra.mxu0 0.0
    %1380 = vmatprep.subr.mxu0 0.0
    %1381 = vmatpush2.msra.mxu0 0.0
    %1382 = vmatprep.subr.mxu0 0.0
    %1383 = vmatpush2.msra.mxu0 0.0
    %1384 = vmatprep.subr.mxu0 0.0
    %1385 = vmatpush2.msra.mxu0 0.0
    %1386 = vmatprep.subr.mxu0 0.0
    %1387 = vmatpush2.msra.mxu0 0.0
    %1388 = vmatprep.subr.mxu0 0.0
    %1389 = vmatpush2.msra.mxu0 0.0
    %1390 = vmatprep.subr.mxu0 0.0
    %1391 = vmatpush2.msra.mxu0 0.0
    %1392 = vmatprep.subr.mxu0 0.0
    %1393 = vmatpush2.msra.mxu0 0.0
    %1394 = vmatprep.subr.mxu0 0.0
    %1395 = vmatpush2.msra.mxu0 0.0
    %1396 = vmatprep.subr.mxu0 0.0
    %1397 = vmatpush2.msra.mxu0 0.0
    %1398 = vmatprep.subr.mxu0 0.0
    %1399 = vmatpush2.msra.mxu0 0.0
    %1400 = vmatprep.mubr.f32.mxu0 0.0
    %1401 = vmatmul.mubr.f32.gmra.mxu0 %v1334
    %v1402 = vpop.f32.mrf.mxu0
    %v1403 = vadd.f32 0.0, %v1402
    %v1404 = vpop.f32.mrf.mxu0
    %1405 = vdwg.mxu0
    %v1406 = vadd.f32 %v1104, %v1403
    %v1407 = vxor.u32 %v1406, 2147483648
    %v1408 = vmul.f32 %v1407, 1.442695
    %v1409 = vpow.pop %v1408
    %v1410 = vadd.f32 %v1409, 1.0
    %v1411 = vrcp.pop %v1410
    %v1412 = vmul.f32 1.0, %v1411
    %v1413 = vtanh.pop %v1406
    %v1414 = vmul.f32 %v1412, %v1324
    %1416 = vrot.lane.b32.xlu0 %v1413, 64
    %v1417 = vpop.permute.xlu0 %1416
    %v1419 = vmul.f32 %v1412, %v1417
    %1421 = vrot.lane.b32.xlu0 %v1419, 32
    %v1422 = vpop.permute.xlu0 %1421
    %v1424 = vadd.f32 %v1414, %v1422
    %v1425 = vtanh.pop %v1424
    %1427 = vrot.lane.b32.xlu0 %v1425, 64
    %v1428 = vpop.permute.xlu0 %1427
    %v1430 = vmul.f32 %v1412, %v1428
    %1432 = vrot.lane.b32.xlu0 %v1430, 32
    %v1433 = vpop.permute.xlu0 %1432
    %v1434 = vsel %vm212, %v1433, 0
    %1436 = vmatprep.subr.mxu0 0.0
    %1437 = vmatpush1.msra.mxu0 0.0
    %1438 = vmatprep.subr.mxu0 0.0
    %1439 = vmatpush1.msra.mxu0 0.0
    %1440 = vmatprep.subr.mxu0 0.0
    %1441 = vmatpush1.msra.mxu0 0.0
    %1442 = vmatprep.subr.mxu0 0.0
    %1443 = vmatpush1.msra.mxu0 0.0
    %1444 = vmatprep.subr.mxu0 0.0
    %1445 = vmatpush1.msra.mxu0 0.0
    %1446 = vmatprep.subr.mxu0 0.0
    %1447 = vmatpush1.msra.mxu0 0.0
    %1448 = vmatprep.subr.mxu0 0.0
    %1449 = vmatpush1.msra.mxu0 0.0
    %1450 = vmatprep.subr.mxu0 0.0
    %1451 = vmatpush1.msra.mxu0 0.0
    %1452 = vmatprep.subr.mxu0 0.0
    %1453 = vmatpush1.msra.mxu0 0.0
    %1454 = vmatprep.subr.mxu0 0.0
    %1455 = vmatpush1.msra.mxu0 0.0
    %1456 = vmatprep.subr.mxu0 0.0
    %1457 = vmatpush1.msra.mxu0 0.0
    %1458 = vmatprep.subr.mxu0 0.0
    %1459 = vmatpush1.msra.mxu0 0.0
    %1460 = vmatprep.subr.mxu0 0.0
    %1461 = vmatpush1.msra.mxu0 %v1135
    %1462 = vmatprep.subr.mxu0 0.0
    %1463 = vmatpush1.msra.mxu0 %v1134
    %1464 = vmatprep.subr.mxu0 0.0
    %1465 = vmatpush1.msra.mxu0 %v1133
    %1466 = vmatprep.subr.mxu0 0.0
    %1467 = vmatpush1.msra.mxu0 %v1132
    %1468 = vmatprep.subr.mxu0 0.0
    %1469 = vmatpush2.msra.mxu0 0.0
    %1470 = vmatprep.subr.mxu0 0.0
    %1471 = vmatpush2.msra.mxu0 0.0
    %1472 = vmatprep.subr.mxu0 0.0
    %1473 = vmatpush2.msra.mxu0 0.0
    %1474 = vmatprep.subr.mxu0 0.0
    %1475 = vmatpush2.msra.mxu0 0.0
    %1476 = vmatprep.subr.mxu0 0.0
    %1477 = vmatpush2.msra.mxu0 0.0
    %1478 = vmatprep.subr.mxu0 0.0
    %1479 = vmatpush2.msra.mxu0 0.0
    %1480 = vmatprep.subr.mxu0 0.0
    %1481 = vmatpush2.msra.mxu0 0.0
    %1482 = vmatprep.subr.mxu0 0.0
    %1483 = vmatpush2.msra.mxu0 0.0
    %1484 = vmatprep.subr.mxu0 0.0
    %1485 = vmatpush2.msra.mxu0 0.0
    %1486 = vmatprep.subr.mxu0 0.0
    %1487 = vmatpush2.msra.mxu0 0.0
    %1488 = vmatprep.subr.mxu0 0.0
    %1489 = vmatpush2.msra.mxu0 0.0
    %1490 = vmatprep.subr.mxu0 0.0
    %1491 = vmatpush2.msra.mxu0 0.0
    %1492 = vmatprep.subr.mxu0 0.0
    %1493 = vmatpush2.msra.mxu0 0.0
    %1494 = vmatprep.subr.mxu0 0.0
    %1495 = vmatpush2.msra.mxu0 0.0
    %1496 = vmatprep.subr.mxu0 0.0
    %1497 = vmatpush2.msra.mxu0 0.0
    %1498 = vmatprep.subr.mxu0 0.0
    %1499 = vmatpush2.msra.mxu0 0.0
    %1500 = vmatprep.mubr.f32.mxu0 0.0
    %1501 = vmatmul.mubr.f32.gmra.mxu0 %v1434
    %v1502 = vpop.f32.mrf.mxu0
    %v1503 = vadd.f32 0.0, %v1502
    %v1504 = vpop.f32.mrf.mxu0
    %1505 = vdwg.mxu0
    %v1506 = vadd.f32 %v1109, %v1503
    %v1507 = vxor.u32 %v1506, 2147483648
    %v1508 = vmul.f32 %v1507, 1.442695
    %v1509 = vpow.pop %v1508
    %v1510 = vadd.f32 %v1509, 1.0
    %v1511 = vrcp.pop %v1510
    %v1512 = vmul.f32 1.0, %v1511
    %v1513 = vtanh.pop %v1506
    %v1514 = vmul.f32 %v1512, %v1424
    %1516 = vrot.lane.b32.xlu0 %v1513, 64
    %v1517 = vpop.permute.xlu0 %1516
    %v1519 = vmul.f32 %v1512, %v1517
    %1521 = vrot.lane.b32.xlu0 %v1519, 32
    %v1522 = vpop.permute.xlu0 %1521
    %v1524 = vadd.f32 %v1514, %v1522
    %v1525 = vtanh.pop %v1524
    %1527 = vrot.lane.b32.xlu0 %v1525, 64
    %v1528 = vpop.permute.xlu0 %1527
    %v1530 = vmul.f32 %v1512, %v1528
    %1532 = vrot.lane.b32.xlu0 %v1530, 32
    %v1533 = vpop.permute.xlu0 %1532
    %v1534 = vsel %vm212, %v1533, 0
    %1536 = vmatprep.subr.mxu0 0.0
    %1537 = vmatpush1.msra.mxu0 0.0
    %1538 = vmatprep.subr.mxu0 0.0
    %1539 = vmatpush1.msra.mxu0 0.0
    %1540 = vmatprep.subr.mxu0 0.0
    %1541 = vmatpush1.msra.mxu0 0.0
    %1542 = vmatprep.subr.mxu0 0.0
    %1543 = vmatpush1.msra.mxu0 0.0
    %1544 = vmatprep.subr.mxu0 0.0
    %1545 = vmatpush1.msra.mxu0 0.0
    %1546 = vmatprep.subr.mxu0 0.0
    %1547 = vmatpush1.msra.mxu0 0.0
    %1548 = vmatprep.subr.mxu0 0.0
    %1549 = vmatpush1.msra.mxu0 0.0
    %1550 = vmatprep.subr.mxu0 0.0
    %1551 = vmatpush1.msra.mxu0 0.0
    %1552 = vmatprep.subr.mxu0 0.0
    %1553 = vmatpush1.msra.mxu0 0.0
    %1554 = vmatprep.subr.mxu0 0.0
    %1555 = vmatpush1.msra.mxu0 0.0
    %1556 = vmatprep.subr.mxu0 0.0
    %1557 = vmatpush1.msra.mxu0 0.0
    %1558 = vmatprep.subr.mxu0 0.0
    %1559 = vmatpush1.msra.mxu0 0.0
    %1560 = vmatprep.subr.mxu0 0.0
    %1561 = vmatpush1.msra.mxu0 %v1135
    %1562 = vmatprep.subr.mxu0 0.0
    %1563 = vmatpush1.msra.mxu0 %v1134
    %1564 = vmatprep.subr.mxu0 0.0
    %1565 = vmatpush1.msra.mxu0 %v1133
    %1566 = vmatprep.subr.mxu0 0.0
    %1567 = vmatpush1.msra.mxu0 %v1132
    %1568 = vmatprep.subr.mxu0 0.0
    %1569 = vmatpush2.msra.mxu0 0.0
    %1570 = vmatprep.subr.mxu0 0.0
    %1571 = vmatpush2.msra.mxu0 0.0
    %1572 = vmatprep.subr.mxu0 0.0
    %1573 = vmatpush2.msra.mxu0 0.0
    %1574 = vmatprep.subr.mxu0 0.0
    %1575 = vmatpush2.msra.mxu0 0.0
    %1576 = vmatprep.subr.mxu0 0.0
    %1577 = vmatpush2.msra.mxu0 0.0
    %1578 = vmatprep.subr.mxu0 0.0
    %1579 = vmatpush2.msra.mxu0 0.0
    %1580 = vmatprep.subr.mxu0 0.0
    %1581 = vmatpush2.msra.mxu0 0.0
    %1582 = vmatprep.subr.mxu0 0.0
    %1583 = vmatpush2.msra.mxu0 0.0
    %1584 = vmatprep.subr.mxu0 0.0
    %1585 = vmatpush2.msra.mxu0 0.0
    %1586 = vmatprep.subr.mxu0 0.0
    %1587 = vmatpush2.msra.mxu0 0.0
    %1588 = vmatprep.subr.mxu0 0.0
    %1589 = vmatpush2.msra.mxu0 0.0
    %1590 = vmatprep.subr.mxu0 0.0
    %1591 = vmatpush2.msra.mxu0 0.0
    %1592 = vmatprep.subr.mxu0 0.0
    %1593 = vmatpush2.msra.mxu0 0.0
    %1594 = vmatprep.subr.mxu0 0.0
    %1595 = vmatpush2.msra.mxu0 0.0
    %1596 = vmatprep.subr.mxu0 0.0
    %1597 = vmatpush2.msra.mxu0 0.0
    %1598 = vmatprep.subr.mxu0 0.0
    %1599 = vmatpush2.msra.mxu0 0.0
    %1600 = vmatprep.mubr.f32.mxu0 0.0
    %1601 = vmatmul.mubr.f32.gmra.mxu0 %v1534
    %v1602 = vpop.f32.mrf.mxu0
    %v1603 = vadd.f32 0.0, %v1602
    %v1604 = vpop.f32.mrf.mxu0
    %1605 = vdwg.mxu0
    %v1606 = vadd.f32 %v1114, %v1603
    %v1607 = vxor.u32 %v1606, 2147483648
    %v1608 = vmul.f32 %v1607, 1.442695
    %v1609 = vpow.pop %v1608
    %v1610 = vadd.f32 %v1609, 1.0
    %v1611 = vrcp.pop %v1610
    %v1612 = vmul.f32 1.0, %v1611
    %v1613 = vtanh.pop %v1606
    %v1614 = vmul.f32 %v1612, %v1524
    %1616 = vrot.lane.b32.xlu0 %v1613, 64
    %v1617 = vpop.permute.xlu0 %1616
    %v1619 = vmul.f32 %v1612, %v1617
    %1621 = vrot.lane.b32.xlu0 %v1619, 32
    %v1622 = vpop.permute.xlu0 %1621
    %v1624 = vadd.f32 %v1614, %v1622
    %v1625 = vtanh.pop %v1624
    %1627 = vrot.lane.b32.xlu0 %v1625, 64
    %v1628 = vpop.permute.xlu0 %1627
    %v1630 = vmul.f32 %v1612, %v1628
    %1632 = vrot.lane.b32.xlu0 %v1630, 32
    %v1633 = vpop.permute.xlu0 %1632
    %v1634 = vsel %vm212, %v1633, 0
    %1636 = vmatprep.subr.mxu0 0.0
    %1637 = vmatpush1.msra.mxu0 0.0
    %1638 = vmatprep.subr.mxu0 0.0
    %1639 = vmatpush1.msra.mxu0 0.0
    %1640 = vmatprep.subr.mxu0 0.0
    %1641 = vmatpush1.msra.mxu0 0.0
    %1642 = vmatprep.subr.mxu0 0.0
    %1643 = vmatpush1.msra.mxu0 0.0
    %1644 = vmatprep.subr.mxu0 0.0
    %1645 = vmatpush1.msra.mxu0 0.0
    %1646 = vmatprep.subr.mxu0 0.0
    %1647 = vmatpush1.msra.mxu0 0.0
    %1648 = vmatprep.subr.mxu0 0.0
    %1649 = vmatpush1.msra.mxu0 0.0
    %1650 = vmatprep.subr.mxu0 0.0
    %1651 = vmatpush1.msra.mxu0 0.0
    %1652 = vmatprep.subr.mxu0 0.0
    %1653 = vmatpush1.msra.mxu0 0.0
    %1654 = vmatprep.subr.mxu0 0.0
    %1655 = vmatpush1.msra.mxu0 0.0
    %1656 = vmatprep.subr.mxu0 0.0
    %1657 = vmatpush1.msra.mxu0 0.0
    %1658 = vmatprep.subr.mxu0 0.0
    %1659 = vmatpush1.msra.mxu0 0.0
    %1660 = vmatprep.subr.mxu0 0.0
    %1661 = vmatpush1.msra.mxu0 %v1135
    %1662 = vmatprep.subr.mxu0 0.0
    %1663 = vmatpush1.msra.mxu0 %v1134
    %1664 = vmatprep.subr.mxu0 0.0
    %1665 = vmatpush1.msra.mxu0 %v1133
    %1666 = vmatprep.subr.mxu0 0.0
    %1667 = vmatpush1.msra.mxu0 %v1132
    %1668 = vmatprep.subr.mxu0 0.0
    %1669 = vmatpush2.msra.mxu0 0.0
    %1670 = vmatprep.subr.mxu0 0.0
    %1671 = vmatpush2.msra.mxu0 0.0
    %1672 = vmatprep.subr.mxu0 0.0
    %1673 = vmatpush2.msra.mxu0 0.0
    %1674 = vmatprep.subr.mxu0 0.0
    %1675 = vmatpush2.msra.mxu0 0.0
    %1676 = vmatprep.subr.mxu0 0.0
    %1677 = vmatpush2.msra.mxu0 0.0
    %1678 = vmatprep.subr.mxu0 0.0
    %1679 = vmatpush2.msra.mxu0 0.0
    %1680 = vmatprep.subr.mxu0 0.0
    %1681 = vmatpush2.msra.mxu0 0.0
    %1682 = vmatprep.subr.mxu0 0.0
    %1683 = vmatpush2.msra.mxu0 0.0
    %1684 = vmatprep.subr.mxu0 0.0
    %1685 = vmatpush2.msra.mxu0 0.0
    %1686 = vmatprep.subr.mxu0 0.0
    %1687 = vmatpush2.msra.mxu0 0.0
    %1688 = vmatprep.subr.mxu0 0.0
    %1689 = vmatpush2.msra.mxu0 0.0
    %1690 = vmatprep.subr.mxu0 0.0
    %1691 = vmatpush2.msra.mxu0 0.0
    %1692 = vmatprep.subr.mxu0 0.0
    %1693 = vmatpush2.msra.mxu0 0.0
    %1694 = vmatprep.subr.mxu0 0.0
    %1695 = vmatpush2.msra.mxu0 0.0
    %1696 = vmatprep.subr.mxu0 0.0
    %1697 = vmatpush2.msra.mxu0 0.0
    %1698 = vmatprep.subr.mxu0 0.0
    %1699 = vmatpush2.msra.mxu0 0.0
    %1700 = vmatprep.mubr.f32.mxu0 0.0
    %1701 = vmatmul.mubr.f32.gmra.mxu0 %v1634
    %v1702 = vpop.f32.mrf.mxu0
    %v1703 = vadd.f32 0.0, %v1702
    %v1704 = vpop.f32.mrf.mxu0
    %1705 = vdwg.mxu0
    %v1706 = vadd.f32 %v1119, %v1703
    %v1707 = vxor.u32 %v1706, 2147483648
    %v1708 = vmul.f32 %v1707, 1.442695
    %v1709 = vpow.pop %v1708
    %v1710 = vadd.f32 %v1709, 1.0
    %v1711 = vrcp.pop %v1710
    %v1712 = vmul.f32 1.0, %v1711
    %v1713 = vtanh.pop %v1706
    %v1714 = vmul.f32 %v1712, %v1624
    %1716 = vrot.lane.b32.xlu0 %v1713, 64
    %v1717 = vpop.permute.xlu0 %1716
    %v1719 = vmul.f32 %v1712, %v1717
    %1721 = vrot.lane.b32.xlu0 %v1719, 32
    %v1722 = vpop.permute.xlu0 %1721
    %v1724 = vadd.f32 %v1714, %v1722
    %v1725 = vtanh.pop %v1724
    %1727 = vrot.lane.b32.xlu0 %v1725, 64
    %v1728 = vpop.permute.xlu0 %1727
    %v1730 = vmul.f32 %v1712, %v1728
    %1732 = vrot.lane.b32.xlu0 %v1730, 32
    %v1733 = vpop.permute.xlu0 %1732
    %v1734 = vsel %vm212, %v1733, 0
    %1736 = vmatprep.subr.mxu0 0.0
    %1737 = vmatpush1.msra.mxu0 0.0
    %1738 = vmatprep.subr.mxu0 0.0
    %1739 = vmatpush1.msra.mxu0 0.0
    %1740 = vmatprep.subr.mxu0 0.0
    %1741 = vmatpush1.msra.mxu0 0.0
    %1742 = vmatprep.subr.mxu0 0.0
    %1743 = vmatpush1.msra.mxu0 0.0
    %1744 = vmatprep.subr.mxu0 0.0
    %1745 = vmatpush1.msra.mxu0 0.0
    %1746 = vmatprep.subr.mxu0 0.0
    %1747 = vmatpush1.msra.mxu0 0.0
    %1748 = vmatprep.subr.mxu0 0.0
    %1749 = vmatpush1.msra.mxu0 0.0
    %1750 = vmatprep.subr.mxu0 0.0
    %1751 = vmatpush1.msra.mxu0 0.0
    %1752 = vmatprep.subr.mxu0 0.0
    %1753 = vmatpush1.msra.mxu0 0.0
    %1754 = vmatprep.subr.mxu0 0.0
    %1755 = vmatpush1.msra.mxu0 0.0
    %1756 = vmatprep.subr.mxu0 0.0
    %1757 = vmatpush1.msra.mxu0 0.0
    %1758 = vmatprep.subr.mxu0 0.0
    %1759 = vmatpush1.msra.mxu0 0.0
    %1760 = vmatprep.subr.mxu0 0.0
    %1761 = vmatpush1.msra.mxu0 %v1135
    %1762 = vmatprep.subr.mxu0 0.0
    %1763 = vmatpush1.msra.mxu0 %v1134
    %1764 = vmatprep.subr.mxu0 0.0
    %1765 = vmatpush1.msra.mxu0 %v1133
    %1766 = vmatprep.subr.mxu0 0.0
    %1767 = vmatpush1.msra.mxu0 %v1132
    %1768 = vmatprep.subr.mxu0 0.0
    %1769 = vmatpush2.msra.mxu0 0.0
    %1770 = vmatprep.subr.mxu0 0.0
    %1771 = vmatpush2.msra.mxu0 0.0
    %1772 = vmatprep.subr.mxu0 0.0
    %1773 = vmatpush2.msra.mxu0 0.0
    %1774 = vmatprep.subr.mxu0 0.0
    %1775 = vmatpush2.msra.mxu0 0.0
    %1776 = vmatprep.subr.mxu0 0.0
    %1777 = vmatpush2.msra.mxu0 0.0
    %1778 = vmatprep.subr.mxu0 0.0
    %1779 = vmatpush2.msra.mxu0 0.0
    %1780 = vmatprep.subr.mxu0 0.0
    %1781 = vmatpush2.msra.mxu0 0.0
    %1782 = vmatprep.subr.mxu0 0.0
    %1783 = vmatpush2.msra.mxu0 0.0
    %1784 = vmatprep.subr.mxu0 0.0
    %1785 = vmatpush2.msra.mxu0 0.0
    %1786 = vmatprep.subr.mxu0 0.0
    %1787 = vmatpush2.msra.mxu0 0.0
    %1788 = vmatprep.subr.mxu0 0.0
    %1789 = vmatpush2.msra.mxu0 0.0
    %1790 = vmatprep.subr.mxu0 0.0
    %1791 = vmatpush2.msra.mxu0 0.0
    %1792 = vmatprep.subr.mxu0 0.0
    %1793 = vmatpush2.msra.mxu0 0.0
    %1794 = vmatprep.subr.mxu0 0.0
    %1795 = vmatpush2.msra.mxu0 0.0
    %1796 = vmatprep.subr.mxu0 0.0
    %1797 = vmatpush2.msra.mxu0 0.0
    %1798 = vmatprep.subr.mxu0 0.0
    %1799 = vmatpush2.msra.mxu0 0.0
    %1800 = vmatprep.mubr.f32.mxu0 0.0
    %1801 = vmatmul.mubr.f32.gmra.mxu0 %v1734
    %v1802 = vpop.f32.mrf.mxu0
    %v1803 = vadd.f32 0.0, %v1802
    %v1804 = vpop.f32.mrf.mxu0
    %1805 = vdwg.mxu0
    %v1806 = vadd.f32 %v1124, %v1803
    %v1807 = vxor.u32 %v1806, 2147483648
    %v1808 = vmul.f32 %v1807, 1.442695
    %v1809 = vpow.pop %v1808
    %v1810 = vadd.f32 %v1809, 1.0
    %v1811 = vrcp.pop %v1810
    %v1812 = vmul.f32 1.0, %v1811
    %v1813 = vtanh.pop %v1806
    %v1814 = vmul.f32 %v1812, %v1724
    %1816 = vrot.lane.b32.xlu0 %v1813, 64
    %v1817 = vpop.permute.xlu0 %1816
    %v1819 = vmul.f32 %v1812, %v1817
    %1821 = vrot.lane.b32.xlu0 %v1819, 32
    %v1822 = vpop.permute.xlu0 %1821
    %v1824 = vadd.f32 %v1814, %v1822
    %v1825 = vtanh.pop %v1824
    %1827 = vrot.lane.b32.xlu0 %v1825, 64
    %v1828 = vpop.permute.xlu0 %1827
    %v1830 = vmul.f32 %v1812, %v1828
    %1832 = vrot.lane.b32.xlu0 %v1830, 32
    %v1833 = vpop.permute.xlu0 %1832
    %v1834 = vsel %vm212, %v1833, 0
    %1836 = vmatprep.subr.mxu0 0.0
    %1837 = vmatpush1.msra.mxu0 0.0
    %1838 = vmatprep.subr.mxu0 0.0
    %1839 = vmatpush1.msra.mxu0 0.0
    %1840 = vmatprep.subr.mxu0 0.0
    %1841 = vmatpush1.msra.mxu0 0.0
    %1842 = vmatprep.subr.mxu0 0.0
    %1843 = vmatpush1.msra.mxu0 0.0
    %1844 = vmatprep.subr.mxu0 0.0
    %1845 = vmatpush1.msra.mxu0 0.0
    %1846 = vmatprep.subr.mxu0 0.0
    %1847 = vmatpush1.msra.mxu0 0.0
    %1848 = vmatprep.subr.mxu0 0.0
    %1849 = vmatpush1.msra.mxu0 0.0
    %1850 = vmatprep.subr.mxu0 0.0
    %1851 = vmatpush1.msra.mxu0 0.0
    %1852 = vmatprep.subr.mxu0 0.0
    %1853 = vmatpush1.msra.mxu0 0.0
    %1854 = vmatprep.subr.mxu0 0.0
    %1855 = vmatpush1.msra.mxu0 0.0
    %1856 = vmatprep.subr.mxu0 0.0
    %1857 = vmatpush1.msra.mxu0 0.0
    %1858 = vmatprep.subr.mxu0 0.0
    %1859 = vmatpush1.msra.mxu0 0.0
    %1860 = vmatprep.subr.mxu0 0.0
    %1861 = vmatpush1.msra.mxu0 %v1135
    %1862 = vmatprep.subr.mxu0 0.0
    %1863 = vmatpush1.msra.mxu0 %v1134
    %1864 = vmatprep.subr.mxu0 0.0
    %1865 = vmatpush1.msra.mxu0 %v1133
    %1866 = vmatprep.subr.mxu0 0.0
    %1867 = vmatpush1.msra.mxu0 %v1132
    %1868 = vmatprep.subr.mxu0 0.0
    %1869 = vmatpush2.msra.mxu0 0.0
    %1870 = vmatprep.subr.mxu0 0.0
    %1871 = vmatpush2.msra.mxu0 0.0
    %1872 = vmatprep.subr.mxu0 0.0
    %1873 = vmatpush2.msra.mxu0 0.0
    %1874 = vmatprep.subr.mxu0 0.0
    %1875 = vmatpush2.msra.mxu0 0.0
    %1876 = vmatprep.subr.mxu0 0.0
    %1877 = vmatpush2.msra.mxu0 0.0
    %1878 = vmatprep.subr.mxu0 0.0
    %1879 = vmatpush2.msra.mxu0 0.0
    %1880 = vmatprep.subr.mxu0 0.0
    %1881 = vmatpush2.msra.mxu0 0.0
    %1882 = vmatprep.subr.mxu0 0.0
    %1883 = vmatpush2.msra.mxu0 0.0
    %1884 = vmatprep.subr.mxu0 0.0
    %1885 = vmatpush2.msra.mxu0 0.0
    %1886 = vmatprep.subr.mxu0 0.0
    %1887 = vmatpush2.msra.mxu0 0.0
    %1888 = vmatprep.subr.mxu0 0.0
    %1889 = vmatpush2.msra.mxu0 0.0
    %1890 = vmatprep.subr.mxu0 0.0
    %1891 = vmatpush2.msra.mxu0 0.0
    %1892 = vmatprep.subr.mxu0 0.0
    %1893 = vmatpush2.msra.mxu0 0.0
    %1894 = vmatprep.subr.mxu0 0.0
    %1895 = vmatpush2.msra.mxu0 0.0
    %1896 = vmatprep.subr.mxu0 0.0
    %1897 = vmatpush2.msra.mxu0 0.0
    %1898 = vmatprep.subr.mxu0 0.0
    %1899 = vmatpush2.msra.mxu0 0.0
    %1900 = vmatprep.mubr.f32.mxu0 0.0
    %1901 = vmatmul.mubr.f32.gmra.mxu0 %v1834
    %v1902 = vpop.f32.mrf.mxu0
    %v1903 = vadd.f32 0.0, %v1902
    %v1904 = vpop.f32.mrf.mxu0
    %1905 = vdwg.mxu0
    %v1906 = vadd.f32 %v1129, %v1903
    %v1907 = vxor.u32 %v1906, 2147483648
    %v1908 = vmul.f32 %v1907, 1.442695
    %v1909 = vpow.pop %v1908
    %v1910 = vadd.f32 %v1909, 1.0
    %v1911 = vrcp.pop %v1910
    %v1912 = vmul.f32 1.0, %v1911
    %v1913 = vtanh.pop %v1906
    %v1914 = vmul.f32 %v1912, %v1824
    %1916 = vrot.lane.b32.xlu0 %v1913, 64
    %v1917 = vpop.permute.xlu0 %1916
    %v1919 = vmul.f32 %v1912, %v1917
    %1921 = vrot.lane.b32.xlu0 %v1919, 32
    %v1922 = vpop.permute.xlu0 %1921
    %v1924 = vadd.f32 %v1914, %v1922
    %v1925 = vtanh.pop %v1924
    %1927 = vrot.lane.b32.xlu0 %v1925, 64
    %v1928 = vpop.permute.xlu0 %1927
    %v1930 = vmul.f32 %v1912, %v1928
    %v1931 = vld [vmem:[#allocation5] sm:$0xff]
    %v1932 = vld [vmem:[#allocation5 + $0x8] sm:$0xff]
    %v1933 = vld [vmem:[#allocation5 + $0x10] sm:$0xff]
    %v1934 = vld [vmem:[#allocation5 + $0x18] sm:$0xff]
    %v1935 = vld [vmem:[%s8] sm:$0x1]
    %v1937 = vlaneseq
    %v1938 = vshrl.u32 %v1937, 7
    %v1939 = vsub.s32 0, %v1938
    %v1940 = vrot.slane %v1935, %v1939
    %1943 = vrot.lane.b32.xlu0 %v1930, 32
    %v1944 = vpop.permute.xlu0 %1943
    %v1945 = vsel %vm212, %v1944, 0
    %1947 = vmatprep.subr.mxu0 0.0
    %1948 = vmatpush1.msra.mxu0 0.0
    %1949 = vmatprep.subr.mxu0 0.0
    %1950 = vmatpush1.msra.mxu0 0.0
    %1951 = vmatprep.subr.mxu0 0.0
    %1952 = vmatpush1.msra.mxu0 0.0
    %1953 = vmatprep.subr.mxu0 0.0
    %1954 = vmatpush1.msra.mxu0 0.0
    %1955 = vmatprep.subr.mxu0 0.0
    %1956 = vmatpush1.msra.mxu0 0.0
    %1957 = vmatprep.subr.mxu0 0.0
    %1958 = vmatpush1.msra.mxu0 0.0
    %1959 = vmatprep.subr.mxu0 0.0
    %1960 = vmatpush1.msra.mxu0 0.0
    %1961 = vmatprep.subr.mxu0 0.0
    %1962 = vmatpush1.msra.mxu0 0.0
    %1963 = vmatprep.subr.mxu0 0.0
    %1964 = vmatpush1.msra.mxu0 0.0
    %1965 = vmatprep.subr.mxu0 0.0
    %1966 = vmatpush1.msra.mxu0 0.0
    %1967 = vmatprep.subr.mxu0 0.0
    %1968 = vmatpush1.msra.mxu0 0.0
    %1969 = vmatprep.subr.mxu0 0.0
    %1970 = vmatpush1.msra.mxu0 0.0
    %1971 = vmatprep.subr.mxu0 0.0
    %1972 = vmatpush1.msra.mxu0 %v1934
    %1973 = vmatprep.subr.mxu0 0.0
    %1974 = vmatpush1.msra.mxu0 %v1933
    %1975 = vmatprep.subr.mxu0 0.0
    %1976 = vmatpush1.msra.mxu0 %v1932
    %1977 = vmatprep.subr.mxu0 0.0
    %1978 = vmatpush1.msra.mxu0 %v1931
    %1979 = vmatprep.subr.mxu0 0.0
    %1980 = vmatpush2.msra.mxu0 0.0
    %1981 = vmatprep.subr.mxu0 0.0
    %1982 = vmatpush2.msra.mxu0 0.0
    %1983 = vmatprep.subr.mxu0 0.0
    %1984 = vmatpush2.msra.mxu0 0.0
    %1985 = vmatprep.subr.mxu0 0.0
    %1986 = vmatpush2.msra.mxu0 0.0
    %1987 = vmatprep.subr.mxu0 0.0
    %1988 = vmatpush2.msra.mxu0 0.0
    %1989 = vmatprep.subr.mxu0 0.0
    %1990 = vmatpush2.msra.mxu0 0.0
    %1991 = vmatprep.subr.mxu0 0.0
    %1992 = vmatpush2.msra.mxu0 0.0
    %1993 = vmatprep.subr.mxu0 0.0
    %1994 = vmatpush2.msra.mxu0 0.0
    %1995 = vmatprep.subr.mxu0 0.0
    %1996 = vmatpush2.msra.mxu0 0.0
    %1997 = vmatprep.subr.mxu0 0.0
    %1998 = vmatpush2.msra.mxu0 0.0
    %1999 = vmatprep.subr.mxu0 0.0
    %2000 = vmatpush2.msra.mxu0 0.0
    %2001 = vmatprep.subr.mxu0 0.0
    %2002 = vmatpush2.msra.mxu0 0.0
    %2003 = vmatprep.subr.mxu0 0.0
    %2004 = vmatpush2.msra.mxu0 0.0
    %2005 = vmatprep.subr.mxu0 0.0
    %2006 = vmatpush2.msra.mxu0 0.0
    %2007 = vmatprep.subr.mxu0 0.0
    %2008 = vmatpush2.msra.mxu0 0.0
    %2009 = vmatprep.subr.mxu0 0.0
    %2010 = vmatpush2.msra.mxu0 0.0
    %2011 = vmatprep.mubr.f32.mxu0 0.0
    %2012 = vmatmul.mubr.f32.gmra.mxu0 %v1234
    %v2013 = vpop.f32.mrf.mxu0
    %v2014 = vadd.f32 %v1940, %v2013
    %v2015 = vpop.f32.mrf.mxu0
    %2016 = vmatprep.mubr.f32.mxu0 0.0
    %2017 = vmatmul.mubr.f32.gmra.mxu0 %v1334
    %v2018 = vpop.f32.mrf.mxu0
    %v2019 = vadd.f32 %v1940, %v2018
    %v2020 = vpop.f32.mrf.mxu0
    %2021 = vmatprep.mubr.f32.mxu0 0.0
    %2022 = vmatmul.mubr.f32.gmra.mxu0 %v1434
    %v2023 = vpop.f32.mrf.mxu0
    %v2024 = vadd.f32 %v1940, %v2023
    %v2025 = vpop.f32.mrf.mxu0
    %2026 = vmatprep.mubr.f32.mxu0 0.0
    %2027 = vmatmul.mubr.f32.gmra.mxu0 %v1534
    %v2028 = vpop.f32.mrf.mxu0
    %v2029 = vadd.f32 %v1940, %v2028
    %v2030 = vpop.f32.mrf.mxu0
    %2031 = vmatprep.mubr.f32.mxu0 0.0
    %2032 = vmatmul.mubr.f32.gmra.mxu0 %v1634
    %v2033 = vpop.f32.mrf.mxu0
    %v2034 = vadd.f32 %v1940, %v2033
    %v2035 = vpop.f32.mrf.mxu0
    %2036 = vmatprep.mubr.f32.mxu0 0.0
    %2037 = vmatmul.mubr.f32.gmra.mxu0 %v1734
    %v2038 = vpop.f32.mrf.mxu0
    %v2039 = vadd.f32 %v1940, %v2038
    %v2040 = vpop.f32.mrf.mxu0
    %2041 = vmatprep.mubr.f32.mxu0 0.0
    %2042 = vmatmul.mubr.f32.gmra.mxu0 %v1834
    %v2043 = vpop.f32.mrf.mxu0
    %v2044 = vadd.f32 %v1940, %v2043
    %v2045 = vpop.f32.mrf.mxu0
    %2046 = vmatprep.mubr.f32.mxu0 0.0
    %2047 = vmatmul.mubr.f32.gmra.mxu0 %v1945
    %v2048 = vpop.f32.mrf.mxu0
    %v2049 = vadd.f32 %v1940, %v2048
    %v2050 = vpop.f32.mrf.mxu0
    %2051 = vdwg.mxu0
    %2052 = vst [vmem:[#allocation7] sm:$0xff] %v2014
    %2053 = vst [vmem:[#allocation7 + $0x8] sm:$0xff] %v2019
    %2054 = vst [vmem:[#allocation7 + $0x10] sm:$0xff] %v2024
    %2055 = vst [vmem:[#allocation7 + $0x18] sm:$0xff] %v2029
    %2056 = vst [vmem:[#allocation7 + $0x20] sm:$0xff] %v2034
    %2057 = vst [vmem:[#allocation7 + $0x28] sm:$0xff] %v2039
    %2058 = vst [vmem:[#allocation7 + $0x30] sm:$0xff] %v2044
    %2059 = vst [vmem:[#allocation7 + $0x38] sm:$0xff] %v2049
    // Predicated region
    $region46: #{tpu_custom_call.1} parent=1 // pred_check
      _
    $region47: #{tpu_custom_call.1} parent=1 // pred_check_branch
      %2061 = sbr.rel (0) target = $region49
    $region48: #{tpu_custom_call.1} parent=1 // pred_region
      %s2063 = ssub.s32 1024, 1024
      %2064 = vsyncadd [#allocation4], %s2063
      %s2065 = sshll.u32 [#allocation7], 4
      %s2066 = int_to_ptr.vmem [resolvable:$true] %s2065
      %2071 = dma.vmem_to_hbm [thread:$0]  %s2066, 1024, %s9, [#allocation4], 128, 128, 8
    $region49: #{tpu_custom_call.1} parent=1 // pred_fallthru
      _
    // Predicated region
    $region50: #{tpu_custom_call.1} parent=1 // pred_check
      _
    $region51: #{tpu_custom_call.1} parent=1 // pred_check_branch
      %2073 = sbr.rel (0) target = $region53
    $region52: #{tpu_custom_call.1} parent=1 // pred_region
      %2074 = dma.done [#allocation4], 1024
    $region53: #{tpu_custom_call.1} parent=1 // pred_fallthru
      _
    %2075 = vsyncpa [#allocation3], 1
    %2076 = vsyncpa [#allocation6], 1
    %2077 = vsyncpa [#allocation4], 1

</llo_original>
